<compile_context>
chip_gen: v6e
topology: v6e:2x2x1
jax: 0.10.0
libtpu: 0.0.40
codegen_flags: <defaults>
</compile_context>

<pallas_src>
import jax
import jax.numpy as jnp
from jax.experimental import pallas as pl
from jax.experimental.pallas import tpu as pltpu


def make_block_kernel(n_head: int, head_size: int, Bb: int, T: int, eps: float = 1e-5):
    C = n_head * head_size
    M = Bb * T

    def kernel(x_ref,
               g1_ref, b1_ref,                 # layer_norm1 gamma/beta      (1, C)   f32
               wqkv_ref,                       # fused [Wq*scale|Wk|Wv]      (C, 3C)  bf16
               wp_ref, bp_ref,                 # attention out projection    (C, C) bf16, (1, C) f32
               g2_ref, b2_ref,                 # layer_norm2 gamma/beta      (1, C)   f32
               w1_ref, bb1_ref,                # FF up   (C, 4C) bf16, (1, 4C) f32
               w2_ref, bb2_ref,                # FF down (4C, C) bf16, (1, C)  f32
               out_ref,                        # (M, C) f32, lane-dense
               attn_ref):                      # VMEM scratch (M, C) bf16
        x = x_ref[...]                         # (M, C) f32 -- already flat, no reshape

        def layernorm(h, g_ref, b_ref):        # f32 math
            mu = jnp.mean(h, axis=-1, keepdims=True)
            var = jnp.mean((h - mu) ** 2, axis=-1, keepdims=True)
            return (h - mu) * jax.lax.rsqrt(var + eps) * g_ref[...] + b_ref[...]

        # ---- multi-head causal self-attention on LN1(x) ----
        h1 = layernorm(x, g1_ref, b1_ref)
        qkv = jnp.dot(h1.astype(jnp.bfloat16), wqkv_ref[...],
                      preferred_element_type=jnp.float32)          # (M, 3C) f32

        # 1/sqrt(head_size) is already folded into the Wq columns (wrapper-side).
        q_all = qkv[:, :C]
        k_all = qkv[:, C:2 * C]
        v_all = qkv[:, 2 * C:]

        row = jax.lax.broadcasted_iota(jnp.int32, (T, T), 0)
        col = jax.lax.broadcasted_iota(jnp.int32, (T, T), 1)
        causal = (col <= row)[None, :, :]                           # (1, T, T)

        # TODO(synk): for production n_head/head_size, group heads into 128-lane
        # stripes (or flash-tile over T) and bound live ranges with lax.fori_loop.
        for hh in range(n_head):                                    # static, n_head small
            sl = slice(hh * head_size, (hh + 1) * head_size)
            qh = q_all[:, sl].astype(jnp.bfloat16).reshape(Bb, T, head_size)
            kh = k_all[:, sl].astype(jnp.bfloat16).reshape(Bb, T, head_size)
            vh = v_all[:, sl].astype(jnp.bfloat16).reshape(Bb, T, head_size)

            s = jnp.einsum("bqd,bkd->bqk", qh, kh,
                           preferred_element_type=jnp.float32)      # (Bb, T, T) f32
            s = jnp.where(causal, s, -1e30)                         # finite mask (NaN-safe)
            s = s - jnp.max(s, axis=-1, keepdims=True)
            p = jnp.exp(s)
            p = p * pl.reciprocal(jnp.sum(p, axis=-1, keepdims=True), approx=True)
            oh = jnp.einsum("bqk,bkd->bqd", p.astype(jnp.bfloat16), vh,
                            preferred_element_type=jnp.float32)     # (Bb, T, hs)
            # head output straight into its column slice of the bf16 scratch
            attn_ref[:, sl] = oh.reshape(M, head_size).astype(jnp.bfloat16)

        proj = jnp.dot(attn_ref[...], wp_ref[...],
                       preferred_element_type=jnp.float32) + bp_ref[...]
        x1 = x + proj                                                # residual 1

        # ---- feed-forward on LN2(x1) ----
        h2 = layernorm(x1, g2_ref, b2_ref)
        ff = jnp.dot(h2.astype(jnp.bfloat16), w1_ref[...],
                     preferred_element_type=jnp.float32) + bb1_ref[...]
        ff = jnp.maximum(ff, 0.0)
        ff = jnp.dot(ff.astype(jnp.bfloat16), w2_ref[...],
                     preferred_element_type=jnp.float32) + bb2_ref[...]

        out_ref[...] = x1 + ff                                       # residual 2, lane-dense store

    return kernel


def _pick_block_batch(B, T, max_rows=512):
    """Largest divisor of B giving a sublane-aligned row block, >=2 grid steps when possible."""
    cands = [d for d in range(1, B + 1)
             if B % d == 0 and (d * T) % 8 == 0 and d * T <= max_rows]
    if not cands:
        return B                      # full-array block is always layout-legal
    # keep >= 2 grid steps when possible so both v7x TensorCores get work
    multi = [d for d in cands if B // d >= 2]
    if multi:
        cands = multi
    # prefer MXU-friendly (multiple of 128) row counts, then the fattest block
    return max(cands, key=lambda d: ((d * T) % 128 == 0, d * T))


def transformer_block(x, params, n_head, *, block_batch=None):
    B, T, C = x.shape
    head_size = C // n_head
    scale = float(head_size) ** -0.5

    Bb = _pick_block_batch(B, T) if block_batch is None else block_batch
    assert B % Bb == 0
    grid = (B // Bb,)
    M = Bb * T

    kernel = make_block_kernel(n_head, head_size, Bb, T)

    # Fused QKV weight with the attention scale folded into Wq; matmul weights
    # cast to bf16 once here (accumulation stays f32 in-kernel).
    wqkv = jnp.concatenate([params["wq"] * scale, params["wk"], params["wv"]],
                           axis=1).astype(jnp.bfloat16)              # (C, 3C)
    wp = params["wp"].astype(jnp.bfloat16)
    w1 = params["w1"].astype(jnp.bfloat16)
    w2 = params["w2"].astype(jnp.bfloat16)

    param_arrays = [params["g1"], params["b1"],
                    wqkv,
                    wp, params["bp"],
                    params["g2"], params["b2"],
                    w1, params["bb1"],
                    w2, params["bb2"]]

    def weight_spec(arr):
        # Full-array block, constant across the grid; single-buffered since the
        # block never changes (halves resident weight VMEM vs. default 2-deep).
        return pl.BlockSpec(arr.shape, lambda b: (0, 0),
                            pipeline_mode=pl.Buffered(1))

    # Flat lane-dense (M, C) activation blocks: no in-kernel reshapes, unmasked vst.
    x2 = x.reshape(B * T, C)
    in_specs = [pl.BlockSpec((M, C), lambda b: (b, 0))] + \
               [weight_spec(p) for p in param_arrays]
    out_spec = pl.BlockSpec((M, C), lambda b: (b, 0))

    # VMEM budget (no fudge factor): single-buffered weights/biases, double-
    # buffered x/out blocks, bf16 attention scratch, f32 intermediates.
    weight_bytes = 2 * (12 * C * C)                 # bf16 wqkv / wp / w1 / w2
    bias_bytes = 4 * (9 * C)                        # f32 biases / LN params
    io_bytes = 2 * 2 * (M * C * 4)                  # pipelined x + out blocks
    scratch_bytes = M * C * 2                       # bf16 attention scratch
    interm_bytes = 4 * M * (3 * C + 4 * C + 6 * C)  # qkv, FF-up, (M,C) temporaries
    vmem_needed = weight_bytes + bias_bytes + io_bytes + scratch_bytes + interm_bytes
    try:
        vmem_cap = int(pltpu.get_tpu_info().vmem_capacity_bytes)
    except Exception:
        vmem_cap = 64 * 1024 * 1024                 # conservative: v7x per-TC VMEM
    vmem_limit = int(min(max(int(1.5 * vmem_needed), 32 * 1024 * 1024),
                         int(0.85 * vmem_cap)))

    out2 = pl.pallas_call(
        kernel,
        out_shape=jax.ShapeDtypeStruct((B * T, C), jnp.float32),
        grid_spec=pltpu.PrefetchScalarGridSpec(
            num_scalar_prefetch=0,
            grid=grid,
            in_specs=in_specs,
            out_specs=out_spec,
            scratch_shapes=[pltpu.VMEM((M, C), jnp.bfloat16)],
        ),
        compiler_params=pltpu.CompilerParams(
            dimension_semantics=("parallel",),
            vmem_limit_bytes=vmem_limit),
    )(x2, *param_arrays)
    return out2.reshape(B, T, C)


def init_params(key, n_embed, n_head):
    C = n_embed
    ks = jax.random.split(key, 8)
    s = 0.02
    params = {
        # layer norms (PyTorch default init: gamma=1, beta=0)
        "g1": jnp.ones((1, C), jnp.float32),
        "b1": jnp.zeros((1, C), jnp.float32),
        "g2": jnp.ones((1, C), jnp.float32),
        "b2": jnp.zeros((1, C), jnp.float32),
        # per-head q/k/v packed column-wise: columns [h*hs:(h+1)*hs] = head h
        "wq": s * jax.random.normal(ks[0], (C, C), jnp.float32),
        "wk": s * jax.random.normal(ks[1], (C, C), jnp.float32),
        "wv": s * jax.random.normal(ks[2], (C, C), jnp.float32),
        # output projection
        "wp": s * jax.random.normal(ks[3], (C, C), jnp.float32),
        "bp": s * jax.random.normal(ks[4], (1, C), jnp.float32),
        # feed-forward
        "w1": s * jax.random.normal(ks[5], (C, 4 * C), jnp.float32),
        "bb1": s * jax.random.normal(ks[6], (1, 4 * C), jnp.float32),
        "w2": s * jax.random.normal(ks[7], (4 * C, C), jnp.float32),
        "bb2": jnp.zeros((1, C), jnp.float32),
    }
    return params


def reference_block(x, p, n_head):
    """Pure-JAX f32 reference mirroring the PyTorch forward (dropout=0)."""
    B, T, C = x.shape
    hs = C // n_head
    eps = 1e-5

    def ln(h, g, b):
        mu = h.mean(-1, keepdims=True)
        var = ((h - mu) ** 2).mean(-1, keepdims=True)
        return (h - mu) / jnp.sqrt(var + eps) * g + b

    h = ln(x, p["g1"][0], p["b1"][0])
    q = h @ p["wq"]; k = h @ p["wk"]; v = h @ p["wv"]
    q = q.reshape(B, T, n_head, hs).transpose(0, 2, 1, 3)
    k = k.reshape(B, T, n_head, hs).transpose(0, 2, 1, 3)
    v = v.reshape(B, T, n_head, hs).transpose(0, 2, 1, 3)
    s = jnp.einsum("bhqd,bhkd->bhqk", q, k) * hs ** -0.5
    mask = jnp.tril(jnp.ones((T, T), bool))
    s = jnp.where(mask, s, -jnp.inf)
    w = jax.nn.softmax(s, axis=-1)
    o = jnp.einsum("bhqk,bhkd->bhqd", w, v).transpose(0, 2, 1, 3).reshape(B, T, C)
    x1 = x + (o @ p["wp"] + p["bp"][0])
    h2 = ln(x1, p["g2"][0], p["b2"][0])
    ff = jnp.maximum(h2 @ p["w1"] + p["bb1"][0], 0.0) @ p["w2"] + p["bb2"][0]
    return x1 + ff


if __name__ == "__main__":
    B, T, n_embed, n_head = 2, 8, 32, 4   # block_size == T == 8
    key = jax.random.PRNGKey(0)
    kx, kp = jax.random.split(key)
    x = jax.random.normal(kx, (B, T, n_embed), jnp.float32)
    params = init_params(kp, n_embed, n_head)

    out = transformer_block(x, params, n_head)
    out = jax.block_until_ready(out)

    ref = reference_block(x, params, n_head)
    assert out.shape == (B, T, n_embed)
    # tolerance loosened vs pure-f32 because matmul operands are bf16
    # (accumulation f32) and the softmax denominator uses approx reciprocal.
    assert jnp.allclose(out, ref, atol=1e-2, rtol=1e-2)

    print("KERNEL_OK")
</pallas_src>

<mosaic_0001>
module attributes {stable_mosaic.version = 11 : i64} {
  func.func @kernel(%arg0: i32, %arg1: memref<8x32xf32, #tpu.memory_space<vmem>>, %arg2: memref<1x32xf32, #tpu.memory_space<vmem>>, %arg3: memref<1x32xf32, #tpu.memory_space<vmem>>, %arg4: memref<32x96xbf16, #tpu.memory_space<vmem>>, %arg5: memref<32x32xbf16, #tpu.memory_space<vmem>>, %arg6: memref<1x32xf32, #tpu.memory_space<vmem>>, %arg7: memref<1x32xf32, #tpu.memory_space<vmem>>, %arg8: memref<1x32xf32, #tpu.memory_space<vmem>>, %arg9: memref<32x128xbf16, #tpu.memory_space<vmem>>, %arg10: memref<1x128xf32, #tpu.memory_space<vmem>>, %arg11: memref<128x32xbf16, #tpu.memory_space<vmem>>, %arg12: memref<1x32xf32, #tpu.memory_space<vmem>>, %arg13: memref<8x32xf32, #tpu.memory_space<vmem>>, %arg14: memref<8x32xbf16, #tpu.memory_space<vmem>>) attributes {dimension_semantics = [#tpu.dimension_semantics<parallel>], iteration_bounds = array<i64: 2>, scalar_prefetch = 0 : i64, scratch_operands = 1 : i64, tpu.core_type = #tpu.core_type<tc>, window_params = [{transform_indices = @transform_0, window_bounds = array<i64: 8, 32>}, {pipeline_mode = #tpu.pipeline_mode<synchronous>, transform_indices = @transform_1, window_bounds = array<i64: 1, 32>}, {pipeline_mode = #tpu.pipeline_mode<synchronous>, transform_indices = @transform_2, window_bounds = array<i64: 1, 32>}, {pipeline_mode = #tpu.pipeline_mode<synchronous>, transform_indices = @transform_3, window_bounds = array<i64: 32, 96>}, {pipeline_mode = #tpu.pipeline_mode<synchronous>, transform_indices = @transform_4, window_bounds = array<i64: 32, 32>}, {pipeline_mode = #tpu.pipeline_mode<synchronous>, transform_indices = @transform_5, window_bounds = array<i64: 1, 32>}, {pipeline_mode = #tpu.pipeline_mode<synchronous>, transform_indices = @transform_6, window_bounds = array<i64: 1, 32>}, {pipeline_mode = #tpu.pipeline_mode<synchronous>, transform_indices = @transform_7, window_bounds = array<i64: 1, 32>}, {pipeline_mode = #tpu.pipeline_mode<synchronous>, transform_indices = @transform_8, window_bounds = array<i64: 32, 128>}, {pipeline_mode = #tpu.pipeline_mode<synchronous>, transform_indices = @transform_9, window_bounds = array<i64: 1, 128>}, {pipeline_mode = #tpu.pipeline_mode<synchronous>, transform_indices = @transform_10, window_bounds = array<i64: 128, 32>}, {pipeline_mode = #tpu.pipeline_mode<synchronous>, transform_indices = @transform_11, window_bounds = array<i64: 1, 32>}, {transform_indices = @transform_12, window_bounds = array<i64: 8, 32>}]} {
    %c0 = arith.constant 0 : index
    %c0_0 = arith.constant 0 : index
    %0 = vector.load %arg1[%c0, %c0_0] : memref<8x32xf32, #tpu.memory_space<vmem>>, vector<8x32xf32>
    %cst = arith.constant dense<0.000000e+00> : vector<8xf32>
    %1 = vector.multi_reduction <add>, %0, %cst [1] : vector<8x32xf32> to vector<8xf32>
    %2 = vector.shape_cast %1 : vector<8xf32> to vector<8x1xf32>
    %cst_1 = arith.constant 3.200000e+01 : f32
    %3 = vector.broadcast %cst_1 : f32 to vector<8x1xf32>
    %4 = arith.divf %2, %3 : vector<8x1xf32>
    %5 = vector.broadcast %4 : vector<8x1xf32> to vector<8x32xf32>
    %6 = arith.subf %0, %5 : vector<8x32xf32>
    %7 = arith.mulf %6, %6 : vector<8x32xf32>
    %cst_2 = arith.constant dense<0.000000e+00> : vector<8xf32>
    %8 = vector.multi_reduction <add>, %7, %cst_2 [1] : vector<8x32xf32> to vector<8xf32>
    %9 = vector.shape_cast %8 : vector<8xf32> to vector<8x1xf32>
    %cst_3 = arith.constant 3.200000e+01 : f32
    %10 = vector.broadcast %cst_3 : f32 to vector<8x1xf32>
    %11 = arith.divf %9, %10 : vector<8x1xf32>
    %12 = vector.broadcast %4 : vector<8x1xf32> to vector<8x32xf32>
    %13 = arith.subf %0, %12 : vector<8x32xf32>
    %cst_4 = arith.constant 9.99999974E-6 : f32
    %14 = vector.broadcast %cst_4 : f32 to vector<8x1xf32>
    %15 = arith.addf %11, %14 : vector<8x1xf32>
    %16 = math.rsqrt %15 : vector<8x1xf32>
    %17 = vector.broadcast %16 : vector<8x1xf32> to vector<8x32xf32>
    %18 = arith.mulf %13, %17 : vector<8x32xf32>
    %c0_5 = arith.constant 0 : index
    %c0_6 = arith.constant 0 : index
    %19 = vector.load %arg2[%c0_5, %c0_6] : memref<1x32xf32, #tpu.memory_space<vmem>>, vector<1x32xf32>
    %20 = vector.broadcast %19 : vector<1x32xf32> to vector<8x32xf32>
    %21 = arith.mulf %18, %20 : vector<8x32xf32>
    %c0_7 = arith.constant 0 : index
    %c0_8 = arith.constant 0 : index
    %22 = vector.load %arg3[%c0_7, %c0_8] : memref<1x32xf32, #tpu.memory_space<vmem>>, vector<1x32xf32>
    %23 = vector.broadcast %22 : vector<1x32xf32> to vector<8x32xf32>
    %24 = arith.addf %21, %23 : vector<8x32xf32>
    %25 = arith.truncf %24 : vector<8x32xf32> to vector<8x32xbf16>
    %c0_9 = arith.constant 0 : index
    %c0_10 = arith.constant 0 : index
    %26 = vector.load %arg4[%c0_9, %c0_10] : memref<32x96xbf16, #tpu.memory_space<vmem>>, vector<32x96xbf16>
    %cst_11 = arith.constant dense<0.000000e+00> : vector<8x96xf32>
    %27 = tpu.matmul %25, %26, %cst_11 {dimension_numbers = #tpu.dot_dimension_numbers<[1], [0], [0], [1], [0, 0, 1, 1], [], []>} : vector<8x32xbf16>, vector<32x96xbf16>, vector<8x96xf32> -> vector<8x96xf32>
    %28 = vector.extract_strided_slice %27 {offsets = [0, 0], sizes = [8, 32], strides = [1, 1]} : vector<8x96xf32> to vector<8x32xf32>
    %29 = vector.extract_strided_slice %27 {offsets = [0, 32], sizes = [8, 32], strides = [1, 1]} : vector<8x96xf32> to vector<8x32xf32>
    %30 = vector.extract_strided_slice %27 {offsets = [0, 64], sizes = [8, 32], strides = [1, 1]} : vector<8x96xf32> to vector<8x32xf32>
    %31 = tpu.iota {dimensions = array<i32: 0>} : vector<8x8xi32>
    %32 = tpu.iota {dimensions = array<i32: 1>} : vector<8x8xi32>
    %33 = arith.cmpi sle, %32, %31 : vector<8x8xi32>
    %34 = vector.shape_cast %33 : vector<8x8xi1> to vector<1x8x8xi1>
    %35 = vector.extract_strided_slice %28 {offsets = [0, 0], sizes = [8, 8], strides = [1, 1]} : vector<8x32xf32> to vector<8x8xf32>
    %36 = arith.truncf %35 : vector<8x8xf32> to vector<8x8xbf16>
    %37 = vector.shape_cast %36 : vector<8x8xbf16> to vector<1x8x8xbf16>
    %38 = vector.extract_strided_slice %29 {offsets = [0, 0], sizes = [8, 8], strides = [1, 1]} : vector<8x32xf32> to vector<8x8xf32>
    %39 = arith.truncf %38 : vector<8x8xf32> to vector<8x8xbf16>
    %40 = vector.shape_cast %39 : vector<8x8xbf16> to vector<1x8x8xbf16>
    %41 = vector.extract_strided_slice %30 {offsets = [0, 0], sizes = [8, 8], strides = [1, 1]} : vector<8x32xf32> to vector<8x8xf32>
    %42 = arith.truncf %41 : vector<8x8xf32> to vector<8x8xbf16>
    %43 = vector.shape_cast %42 : vector<8x8xbf16> to vector<1x8x8xbf16>
    "tpu.trace_start"() <{level = 10 : i32, message = "bqd,bkd->bqk"}> : () -> ()
    %cst_12 = arith.constant dense<0.000000e+00> : vector<1x8x8xf32>
    %44 = tpu.matmul %37, %40, %cst_12 {dimension_numbers = #tpu.dot_dimension_numbers<[2], [2], [1], [1], [0, 0, 0, 1, 1, 1], [0], [0]>} : vector<1x8x8xbf16>, vector<1x8x8xbf16>, vector<1x8x8xf32> -> vector<1x8x8xf32>
    %cst_13 = arith.constant -1.000000e+30 : f32
    "tpu.trace_stop"() : () -> ()
    %45 = vector.broadcast %cst_13 : f32 to vector<1x8x8xf32>
    %46 = arith.select %34, %44, %45 : vector<1x8x8xi1>, vector<1x8x8xf32>
    %cst_14 = arith.constant dense<0xFF800000> : vector<1x8xf32>
    %47 = vector.multi_reduction <maximumf>, %46, %cst_14 [2] : vector<1x8x8xf32> to vector<1x8xf32>
    %48 = vector.shape_cast %47 : vector<1x8xf32> to vector<1x8x1xf32>
    %49 = vector.broadcast %48 : vector<1x8x1xf32> to vector<1x8x8xf32>
    %50 = arith.subf %46, %49 : vector<1x8x8xf32>
    %51 = math.exp %50 : vector<1x8x8xf32>
    %cst_15 = arith.constant dense<0.000000e+00> : vector<1x8xf32>
    %52 = vector.multi_reduction <add>, %51, %cst_15 [2] : vector<1x8x8xf32> to vector<1x8xf32>
    %53 = vector.shape_cast %52 : vector<1x8xf32> to vector<1x8x1xf32>
    %54 = tpu.reciprocal %53 {approx = true} : vector<1x8x1xf32> -> vector<1x8x1xf32>
    %55 = vector.broadcast %54 : vector<1x8x1xf32> to vector<1x8x8xf32>
    %56 = arith.mulf %51, %55 : vector<1x8x8xf32>
    %57 = arith.truncf %56 : vector<1x8x8xf32> to vector<1x8x8xbf16>
    "tpu.trace_start"() <{level = 10 : i32, message = "bqk,bkd->bqd"}> : () -> ()
    %cst_16 = arith.constant dense<0.000000e+00> : vector<1x8x8xf32>
    %58 = tpu.matmul %57, %43, %cst_16 {dimension_numbers = #tpu.dot_dimension_numbers<[2], [1], [1], [2], [0, 0, 0, 1, 1, 2], [0], [0]>} : vector<1x8x8xbf16>, vector<1x8x8xbf16>, vector<1x8x8xf32> -> vector<1x8x8xf32>
    "tpu.trace_stop"() : () -> ()
    %59 = vector.shape_cast %58 : vector<1x8x8xf32> to vector<8x8xf32>
    %60 = arith.truncf %59 : vector<8x8xf32> to vector<8x8xbf16>
    %c0_17 = arith.constant 0 : index
    %c0_18 = arith.constant 0 : index
    %61 = vector.load %arg14[%c0_17, %c0_18] : memref<8x32xbf16, #tpu.memory_space<vmem>>, vector<8x8xbf16>
    tpu.vector_store %arg14[%c0_17, %c0_18], %60 {strides = array<i32>} : memref<8x32xbf16, #tpu.memory_space<vmem>>, vector<8x8xbf16>,
    %62 = vector.extract_strided_slice %28 {offsets = [0, 8], sizes = [8, 8], strides = [1, 1]} : vector<8x32xf32> to vector<8x8xf32>
    %63 = arith.truncf %62 : vector<8x8xf32> to vector<8x8xbf16>
    %64 = vector.shape_cast %63 : vector<8x8xbf16> to vector<1x8x8xbf16>
    %65 = vector.extract_strided_slice %29 {offsets = [0, 8], sizes = [8, 8], strides = [1, 1]} : vector<8x32xf32> to vector<8x8xf32>
    %66 = arith.truncf %65 : vector<8x8xf32> to vector<8x8xbf16>
    %67 = vector.shape_cast %66 : vector<8x8xbf16> to vector<1x8x8xbf16>
    %68 = vector.extract_strided_slice %30 {offsets = [0, 8], sizes = [8, 8], strides = [1, 1]} : vector<8x32xf32> to vector<8x8xf32>
    %69 = arith.truncf %68 : vector<8x8xf32> to vector<8x8xbf16>
    %70 = vector.shape_cast %69 : vector<8x8xbf16> to vector<1x8x8xbf16>
    "tpu.trace_start"() <{level = 10 : i32, message = "bqd,bkd->bqk"}> : () -> ()
    %cst_19 = arith.constant dense<0.000000e+00> : vector<1x8x8xf32>
    %71 = tpu.matmul %64, %67, %cst_19 {dimension_numbers = #tpu.dot_dimension_numbers<[2], [2], [1], [1], [0, 0, 0, 1, 1, 1], [0], [0]>} : vector<1x8x8xbf16>, vector<1x8x8xbf16>, vector<1x8x8xf32> -> vector<1x8x8xf32>
    %cst_20 = arith.constant -1.000000e+30 : f32
    "tpu.trace_stop"() : () -> ()
    %72 = vector.broadcast %cst_20 : f32 to vector<1x8x8xf32>
    %73 = arith.select %34, %71, %72 : vector<1x8x8xi1>, vector<1x8x8xf32>
    %cst_21 = arith.constant dense<0xFF800000> : vector<1x8xf32>
    %74 = vector.multi_reduction <maximumf>, %73, %cst_21 [2] : vector<1x8x8xf32> to vector<1x8xf32>
    %75 = vector.shape_cast %74 : vector<1x8xf32> to vector<1x8x1xf32>
    %76 = vector.broadcast %75 : vector<1x8x1xf32> to vector<1x8x8xf32>
    %77 = arith.subf %73, %76 : vector<1x8x8xf32>
    %78 = math.exp %77 : vector<1x8x8xf32>
    %cst_22 = arith.constant dense<0.000000e+00> : vector<1x8xf32>
    %79 = vector.multi_reduction <add>, %78, %cst_22 [2] : vector<1x8x8xf32> to vector<1x8xf32>
    %80 = vector.shape_cast %79 : vector<1x8xf32> to vector<1x8x1xf32>
    %81 = tpu.reciprocal %80 {approx = true} : vector<1x8x1xf32> -> vector<1x8x1xf32>
    %82 = vector.broadcast %81 : vector<1x8x1xf32> to vector<1x8x8xf32>
    %83 = arith.mulf %78, %82 : vector<1x8x8xf32>
    %84 = arith.truncf %83 : vector<1x8x8xf32> to vector<1x8x8xbf16>
    "tpu.trace_start"() <{level = 10 : i32, message = "bqk,bkd->bqd"}> : () -> ()
    %cst_23 = arith.constant dense<0.000000e+00> : vector<1x8x8xf32>
    %85 = tpu.matmul %84, %70, %cst_23 {dimension_numbers = #tpu.dot_dimension_numbers<[2], [1], [1], [2], [0, 0, 0, 1, 1, 2], [0], [0]>} : vector<1x8x8xbf16>, vector<1x8x8xbf16>, vector<1x8x8xf32> -> vector<1x8x8xf32>
    "tpu.trace_stop"() : () -> ()
    %86 = vector.shape_cast %85 : vector<1x8x8xf32> to vector<8x8xf32>
    %87 = arith.truncf %86 : vector<8x8xf32> to vector<8x8xbf16>
    %c0_24 = arith.constant 0 : index
    %c8 = arith.constant 8 : index
    %88 = vector.load %arg14[%c0_24, %c8] : memref<8x32xbf16, #tpu.memory_space<vmem>>, vector<8x8xbf16>
    tpu.vector_store %arg14[%c0_24, %c8], %87 {strides = array<i32>} : memref<8x32xbf16, #tpu.memory_space<vmem>>, vector<8x8xbf16>,
    %89 = vector.extract_strided_slice %28 {offsets = [0, 16], sizes = [8, 8], strides = [1, 1]} : vector<8x32xf32> to vector<8x8xf32>
    %90 = arith.truncf %89 : vector<8x8xf32> to vector<8x8xbf16>
    %91 = vector.shape_cast %90 : vector<8x8xbf16> to vector<1x8x8xbf16>
    %92 = vector.extract_strided_slice %29 {offsets = [0, 16], sizes = [8, 8], strides = [1, 1]} : vector<8x32xf32> to vector<8x8xf32>
    %93 = arith.truncf %92 : vector<8x8xf32> to vector<8x8xbf16>
    %94 = vector.shape_cast %93 : vector<8x8xbf16> to vector<1x8x8xbf16>
    %95 = vector.extract_strided_slice %30 {offsets = [0, 16], sizes = [8, 8], strides = [1, 1]} : vector<8x32xf32> to vector<8x8xf32>
    %96 = arith.truncf %95 : vector<8x8xf32> to vector<8x8xbf16>
    %97 = vector.shape_cast %96 : vector<8x8xbf16> to vector<1x8x8xbf16>
    "tpu.trace_start"() <{level = 10 : i32, message = "bqd,bkd->bqk"}> : () -> ()
    %cst_25 = arith.constant dense<0.000000e+00> : vector<1x8x8xf32>
    %98 = tpu.matmul %91, %94, %cst_25 {dimension_numbers = #tpu.dot_dimension_numbers<[2], [2], [1], [1], [0, 0, 0, 1, 1, 1], [0], [0]>} : vector<1x8x8xbf16>, vector<1x8x8xbf16>, vector<1x8x8xf32> -> vector<1x8x8xf32>
    %cst_26 = arith.constant -1.000000e+30 : f32
    "tpu.trace_stop"() : () -> ()
    %99 = vector.broadcast %cst_26 : f32 to vector<1x8x8xf32>
    %100 = arith.select %34, %98, %99 : vector<1x8x8xi1>, vector<1x8x8xf32>
    %cst_27 = arith.constant dense<0xFF800000> : vector<1x8xf32>
    %101 = vector.multi_reduction <maximumf>, %100, %cst_27 [2] : vector<1x8x8xf32> to vector<1x8xf32>
    %102 = vector.shape_cast %101 : vector<1x8xf32> to vector<1x8x1xf32>
    %103 = vector.broadcast %102 : vector<1x8x1xf32> to vector<1x8x8xf32>
    %104 = arith.subf %100, %103 : vector<1x8x8xf32>
    %105 = math.exp %104 : vector<1x8x8xf32>
    %cst_28 = arith.constant dense<0.000000e+00> : vector<1x8xf32>
    %106 = vector.multi_reduction <add>, %105, %cst_28 [2] : vector<1x8x8xf32> to vector<1x8xf32>
    %107 = vector.shape_cast %106 : vector<1x8xf32> to vector<1x8x1xf32>
    %108 = tpu.reciprocal %107 {approx = true} : vector<1x8x1xf32> -> vector<1x8x1xf32>
    %109 = vector.broadcast %108 : vector<1x8x1xf32> to vector<1x8x8xf32>
    %110 = arith.mulf %105, %109 : vector<1x8x8xf32>
    %111 = arith.truncf %110 : vector<1x8x8xf32> to vector<1x8x8xbf16>
    "tpu.trace_start"() <{level = 10 : i32, message = "bqk,bkd->bqd"}> : () -> ()
    %cst_29 = arith.constant dense<0.000000e+00> : vector<1x8x8xf32>
    %112 = tpu.matmul %111, %97, %cst_29 {dimension_numbers = #tpu.dot_dimension_numbers<[2], [1], [1], [2], [0, 0, 0, 1, 1, 2], [0], [0]>} : vector<1x8x8xbf16>, vector<1x8x8xbf16>, vector<1x8x8xf32> -> vector<1x8x8xf32>
    "tpu.trace_stop"() : () -> ()
    %113 = vector.shape_cast %112 : vector<1x8x8xf32> to vector<8x8xf32>
    %114 = arith.truncf %113 : vector<8x8xf32> to vector<8x8xbf16>
    %c0_30 = arith.constant 0 : index
    %c16 = arith.constant 16 : index
    %115 = vector.load %arg14[%c0_30, %c16] : memref<8x32xbf16, #tpu.memory_space<vmem>>, vector<8x8xbf16>
    tpu.vector_store %arg14[%c0_30, %c16], %114 {strides = array<i32>} : memref<8x32xbf16, #tpu.memory_space<vmem>>, vector<8x8xbf16>,
    %116 = vector.extract_strided_slice %28 {offsets = [0, 24], sizes = [8, 8], strides = [1, 1]} : vector<8x32xf32> to vector<8x8xf32>
    %117 = arith.truncf %116 : vector<8x8xf32> to vector<8x8xbf16>
    %118 = vector.shape_cast %117 : vector<8x8xbf16> to vector<1x8x8xbf16>
    %119 = vector.extract_strided_slice %29 {offsets = [0, 24], sizes = [8, 8], strides = [1, 1]} : vector<8x32xf32> to vector<8x8xf32>
    %120 = arith.truncf %119 : vector<8x8xf32> to vector<8x8xbf16>
    %121 = vector.shape_cast %120 : vector<8x8xbf16> to vector<1x8x8xbf16>
    %122 = vector.extract_strided_slice %30 {offsets = [0, 24], sizes = [8, 8], strides = [1, 1]} : vector<8x32xf32> to vector<8x8xf32>
    %123 = arith.truncf %122 : vector<8x8xf32> to vector<8x8xbf16>
    %124 = vector.shape_cast %123 : vector<8x8xbf16> to vector<1x8x8xbf16>
    "tpu.trace_start"() <{level = 10 : i32, message = "bqd,bkd->bqk"}> : () -> ()
    %cst_31 = arith.constant dense<0.000000e+00> : vector<1x8x8xf32>
    %125 = tpu.matmul %118, %121, %cst_31 {dimension_numbers = #tpu.dot_dimension_numbers<[2], [2], [1], [1], [0, 0, 0, 1, 1, 1], [0], [0]>} : vector<1x8x8xbf16>, vector<1x8x8xbf16>, vector<1x8x8xf32> -> vector<1x8x8xf32>
    %cst_32 = arith.constant -1.000000e+30 : f32
    "tpu.trace_stop"() : () -> ()
    %126 = vector.broadcast %cst_32 : f32 to vector<1x8x8xf32>
    %127 = arith.select %34, %125, %126 : vector<1x8x8xi1>, vector<1x8x8xf32>
    %cst_33 = arith.constant dense<0xFF800000> : vector<1x8xf32>
    %128 = vector.multi_reduction <maximumf>, %127, %cst_33 [2] : vector<1x8x8xf32> to vector<1x8xf32>
    %129 = vector.shape_cast %128 : vector<1x8xf32> to vector<1x8x1xf32>
    %130 = vector.broadcast %129 : vector<1x8x1xf32> to vector<1x8x8xf32>
    %131 = arith.subf %127, %130 : vector<1x8x8xf32>
    %132 = math.exp %131 : vector<1x8x8xf32>
    %cst_34 = arith.constant dense<0.000000e+00> : vector<1x8xf32>
    %133 = vector.multi_reduction <add>, %132, %cst_34 [2] : vector<1x8x8xf32> to vector<1x8xf32>
    %134 = vector.shape_cast %133 : vector<1x8xf32> to vector<1x8x1xf32>
    %135 = tpu.reciprocal %134 {approx = true} : vector<1x8x1xf32> -> vector<1x8x1xf32>
    %136 = vector.broadcast %135 : vector<1x8x1xf32> to vector<1x8x8xf32>
    %137 = arith.mulf %132, %136 : vector<1x8x8xf32>
    %138 = arith.truncf %137 : vector<1x8x8xf32> to vector<1x8x8xbf16>
    "tpu.trace_start"() <{level = 10 : i32, message = "bqk,bkd->bqd"}> : () -> ()
    %cst_35 = arith.constant dense<0.000000e+00> : vector<1x8x8xf32>
    %139 = tpu.matmul %138, %124, %cst_35 {dimension_numbers = #tpu.dot_dimension_numbers<[2], [1], [1], [2], [0, 0, 0, 1, 1, 2], [0], [0]>} : vector<1x8x8xbf16>, vector<1x8x8xbf16>, vector<1x8x8xf32> -> vector<1x8x8xf32>
    "tpu.trace_stop"() : () -> ()
    %140 = vector.shape_cast %139 : vector<1x8x8xf32> to vector<8x8xf32>
    %141 = arith.truncf %140 : vector<8x8xf32> to vector<8x8xbf16>
    %c0_36 = arith.constant 0 : index
    %c24 = arith.constant 24 : index
    %142 = vector.load %arg14[%c0_36, %c24] : memref<8x32xbf16, #tpu.memory_space<vmem>>, vector<8x8xbf16>
    tpu.vector_store %arg14[%c0_36, %c24], %141 {strides = array<i32>} : memref<8x32xbf16, #tpu.memory_space<vmem>>, vector<8x8xbf16>,
    %c0_37 = arith.constant 0 : index
    %c0_38 = arith.constant 0 : index
    %143 = vector.load %arg14[%c0_37, %c0_38] : memref<8x32xbf16, #tpu.memory_space<vmem>>, vector<8x32xbf16>
    %c0_39 = arith.constant 0 : index
    %c0_40 = arith.constant 0 : index
    %144 = vector.load %arg5[%c0_39, %c0_40] : memref<32x32xbf16, #tpu.memory_space<vmem>>, vector<32x32xbf16>
    %cst_41 = arith.constant dense<0.000000e+00> : vector<8x32xf32>
    %145 = tpu.matmul %143, %144, %cst_41 {dimension_numbers = #tpu.dot_dimension_numbers<[1], [0], [0], [1], [0, 0, 1, 1], [], []>} : vector<8x32xbf16>, vector<32x32xbf16>, vector<8x32xf32> -> vector<8x32xf32>
    %c0_42 = arith.constant 0 : index
    %c0_43 = arith.constant 0 : index
    %146 = vector.load %arg6[%c0_42, %c0_43] : memref<1x32xf32, #tpu.memory_space<vmem>>, vector<1x32xf32>
    %147 = vector.broadcast %146 : vector<1x32xf32> to vector<8x32xf32>
    %148 = arith.addf %145, %147 : vector<8x32xf32>
    %149 = arith.addf %0, %148 : vector<8x32xf32>
    %cst_44 = arith.constant dense<0.000000e+00> : vector<8xf32>
    %150 = vector.multi_reduction <add>, %149, %cst_44 [1] : vector<8x32xf32> to vector<8xf32>
    %151 = vector.shape_cast %150 : vector<8xf32> to vector<8x1xf32>
    %cst_45 = arith.constant 3.200000e+01 : f32
    %152 = vector.broadcast %cst_45 : f32 to vector<8x1xf32>
    %153 = arith.divf %151, %152 : vector<8x1xf32>
    %154 = vector.broadcast %153 : vector<8x1xf32> to vector<8x32xf32>
    %155 = arith.subf %149, %154 : vector<8x32xf32>
    %156 = arith.mulf %155, %155 : vector<8x32xf32>
    %cst_46 = arith.constant dense<0.000000e+00> : vector<8xf32>
    %157 = vector.multi_reduction <add>, %156, %cst_46 [1] : vector<8x32xf32> to vector<8xf32>
    %158 = vector.shape_cast %157 : vector<8xf32> to vector<8x1xf32>
    %cst_47 = arith.constant 3.200000e+01 : f32
    %159 = vector.broadcast %cst_47 : f32 to vector<8x1xf32>
    %160 = arith.divf %158, %159 : vector<8x1xf32>
    %161 = vector.broadcast %153 : vector<8x1xf32> to vector<8x32xf32>
    %162 = arith.subf %149, %161 : vector<8x32xf32>
    %cst_48 = arith.constant 9.99999974E-6 : f32
    %163 = vector.broadcast %cst_48 : f32 to vector<8x1xf32>
    %164 = arith.addf %160, %163 : vector<8x1xf32>
    %165 = math.rsqrt %164 : vector<8x1xf32>
    %166 = vector.broadcast %165 : vector<8x1xf32> to vector<8x32xf32>
    %167 = arith.mulf %162, %166 : vector<8x32xf32>
    %c0_49 = arith.constant 0 : index
    %c0_50 = arith.constant 0 : index
    %168 = vector.load %arg7[%c0_49, %c0_50] : memref<1x32xf32, #tpu.memory_space<vmem>>, vector<1x32xf32>
    %169 = vector.broadcast %168 : vector<1x32xf32> to vector<8x32xf32>
    %170 = arith.mulf %167, %169 : vector<8x32xf32>
    %c0_51 = arith.constant 0 : index
    %c0_52 = arith.constant 0 : index
    %171 = vector.load %arg8[%c0_51, %c0_52] : memref<1x32xf32, #tpu.memory_space<vmem>>, vector<1x32xf32>
    %172 = vector.broadcast %171 : vector<1x32xf32> to vector<8x32xf32>
    %173 = arith.addf %170, %172 : vector<8x32xf32>
    %174 = arith.truncf %173 : vector<8x32xf32> to vector<8x32xbf16>
    %c0_53 = arith.constant 0 : index
    %c0_54 = arith.constant 0 : index
    %175 = vector.load %arg9[%c0_53, %c0_54] : memref<32x128xbf16, #tpu.memory_space<vmem>>, vector<32x128xbf16>
    %cst_55 = arith.constant dense<0.000000e+00> : vector<8x128xf32>
    %176 = tpu.matmul %174, %175, %cst_55 {dimension_numbers = #tpu.dot_dimension_numbers<[1], [0], [0], [1], [0, 0, 1, 1], [], []>} : vector<8x32xbf16>, vector<32x128xbf16>, vector<8x128xf32> -> vector<8x128xf32>
    %c0_56 = arith.constant 0 : index
    %c0_57 = arith.constant 0 : index
    %177 = vector.load %arg10[%c0_56, %c0_57] : memref<1x128xf32, #tpu.memory_space<vmem>>, vector<1x128xf32>
    %178 = vector.broadcast %177 : vector<1x128xf32> to vector<8x128xf32>
    %179 = arith.addf %176, %178 : vector<8x128xf32>
    %cst_58 = arith.constant 0.000000e+00 : f32
    %180 = vector.broadcast %cst_58 : f32 to vector<8x128xf32>
    %181 = arith.maximumf %179, %180 : vector<8x128xf32>
    %182 = arith.truncf %181 : vector<8x128xf32> to vector<8x128xbf16>
    %c0_59 = arith.constant 0 : index
    %c0_60 = arith.constant 0 : index
    %183 = vector.load %arg11[%c0_59, %c0_60] : memref<128x32xbf16, #tpu.memory_space<vmem>>, vector<128x32xbf16>
    %cst_61 = arith.constant dense<0.000000e+00> : vector<8x32xf32>
    %184 = tpu.matmul %182, %183, %cst_61 {dimension_numbers = #tpu.dot_dimension_numbers<[1], [0], [0], [1], [0, 0, 1, 1], [], []>} : vector<8x128xbf16>, vector<128x32xbf16>, vector<8x32xf32> -> vector<8x32xf32>
    %c0_62 = arith.constant 0 : index
    %c0_63 = arith.constant 0 : index
    %185 = vector.load %arg12[%c0_62, %c0_63] : memref<1x32xf32, #tpu.memory_space<vmem>>, vector<1x32xf32>
    %186 = vector.broadcast %185 : vector<1x32xf32> to vector<8x32xf32>
    %187 = arith.addf %184, %186 : vector<8x32xf32>
    %188 = arith.addf %149, %187 : vector<8x32xf32>
    %c0_64 = arith.constant 0 : index
    %c0_65 = arith.constant 0 : index
    %189 = vector.load %arg13[%c0_64, %c0_65] : memref<8x32xf32, #tpu.memory_space<vmem>>, vector<8x32xf32>
    tpu.vector_store %arg13[%c0_64, %c0_65], %188 {strides = array<i32>} : memref<8x32xf32, #tpu.memory_space<vmem>>, vector<8x32xf32>,
    return
  }
  func.func @transform_0(%arg0: i32) -> (i32, i32) {
    %c0_i32 = arith.constant 0 : i32
    %c0_i32_0 = arith.constant 0 : i32
    return %arg0, %c0_i32 : i32, i32
  }
  func.func @transform_1(%arg0: i32) -> (i32, i32) {
    %c0_i32 = arith.constant 0 : i32
    %c0_i32_0 = arith.constant 0 : i32
    %c0_i32_1 = arith.constant 0 : i32
    return %c0_i32, %c0_i32_0 : i32, i32
  }
  func.func @transform_2(%arg0: i32) -> (i32, i32) {
    %c0_i32 = arith.constant 0 : i32
    %c0_i32_0 = arith.constant 0 : i32
    %c0_i32_1 = arith.constant 0 : i32
    return %c0_i32, %c0_i32_0 : i32, i32
  }
  func.func @transform_3(%arg0: i32) -> (i32, i32) {
    %c0_i32 = arith.constant 0 : i32
    %c0_i32_0 = arith.constant 0 : i32
    %c0_i32_1 = arith.constant 0 : i32
    return %c0_i32, %c0_i32_0 : i32, i32
  }
  func.func @transform_4(%arg0: i32) -> (i32, i32) {
    %c0_i32 = arith.constant 0 : i32
    %c0_i32_0 = arith.constant 0 : i32
    %c0_i32_1 = arith.constant 0 : i32
    return %c0_i32, %c0_i32_0 : i32, i32
  }
  func.func @transform_5(%arg0: i32) -> (i32, i32) {
    %c0_i32 = arith.constant 0 : i32
    %c0_i32_0 = arith.constant 0 : i32
    %c0_i32_1 = arith.constant 0 : i32
    return %c0_i32, %c0_i32_0 : i32, i32
  }
  func.func @transform_6(%arg0: i32) -> (i32, i32) {
    %c0_i32 = arith.constant 0 : i32
    %c0_i32_0 = arith.constant 0 : i32
    %c0_i32_1 = arith.constant 0 : i32
    return %c0_i32, %c0_i32_0 : i32, i32
  }
  func.func @transform_7(%arg0: i32) -> (i32, i32) {
    %c0_i32 = arith.constant 0 : i32
    %c0_i32_0 = arith.constant 0 : i32
    %c0_i32_1 = arith.constant 0 : i32
    return %c0_i32, %c0_i32_0 : i32, i32
  }
  func.func @transform_8(%arg0: i32) -> (i32, i32) {
    %c0_i32 = arith.constant 0 : i32
    %c0_i32_0 = arith.constant 0 : i32
    %c0_i32_1 = arith.constant 0 : i32
    return %c0_i32, %c0_i32_0 : i32, i32
  }
  func.func @transform_9(%arg0: i32) -> (i32, i32) {
    %c0_i32 = arith.constant 0 : i32
    %c0_i32_0 = arith.constant 0 : i32
    %c0_i32_1 = arith.constant 0 : i32
    return %c0_i32, %c0_i32_0 : i32, i32
  }
  func.func @transform_10(%arg0: i32) -> (i32, i32) {
    %c0_i32 = arith.constant 0 : i32
    %c0_i32_0 = arith.constant 0 : i32
    %c0_i32_1 = arith.constant 0 : i32
    return %c0_i32, %c0_i32_0 : i32, i32
  }
  func.func @transform_11(%arg0: i32) -> (i32, i32) {
    %c0_i32 = arith.constant 0 : i32
    %c0_i32_0 = arith.constant 0 : i32
    %c0_i32_1 = arith.constant 0 : i32
    return %c0_i32, %c0_i32_0 : i32, i32
  }
  func.func @transform_12(%arg0: i32) -> (i32, i32) {
    %c0_i32 = arith.constant 0 : i32
    %c0_i32_0 = arith.constant 0 : i32
    return %arg0, %c0_i32 : i32, i32
  }
}

</mosaic_0001>

<llo_original>
// kernel: tpu_custom_call.1
$region0: #{tpu_custom_call.1}
  #allocation0 [shape = 'u32[]', space=smem, size = 0x4, offset = 0x4, fixed_abs, tag = 'smem constant byte address 0x4 - core index']
  #allocation1 [shape = 'u32[144,128]{1,0:T(1,128)}', space=vmem, size = 0x12000, scoped, tag = 'internal scratch']
  #allocation2 [shape = 'bf16[8,32]{1,0:T(8,128)(2,1)}', space=vmem, size = 0x800, scoped, tag = 'scratch operand']
  %s0 = inlined_call_operand.vmem [shape: f32[16,32], index: 0, kind: input, shape index: {}]
  %s1 = inlined_call_operand.vmem [shape: f32[1,32], index: 1, kind: input, shape index: {}]
  %s2 = inlined_call_operand.vmem [shape: f32[1,32], index: 2, kind: input, shape index: {}]
  %s3 = inlined_call_operand.vmem [shape: bf16[32,96], index: 3, kind: input, shape index: {}]
  %s4 = inlined_call_operand.vmem [shape: bf16[32,32], index: 4, kind: input, shape index: {}]
  %s5 = inlined_call_operand.vmem [shape: f32[1,32], index: 5, kind: input, shape index: {}]
  %s6 = inlined_call_operand.vmem [shape: f32[1,32], index: 6, kind: input, shape index: {}]
  %s7 = inlined_call_operand.vmem [shape: f32[1,32], index: 7, kind: input, shape index: {}]
  %s8 = inlined_call_operand.vmem [shape: bf16[32,128], index: 8, kind: input, shape index: {}]
  %s9 = inlined_call_operand.vmem [shape: f32[1,128], index: 9, kind: input, shape index: {}]
  %s10 = inlined_call_operand.vmem [shape: bf16[128,32], index: 10, kind: input, shape index: {}]
  %s11 = inlined_call_operand.vmem [shape: f32[1,32], index: 11, kind: input, shape index: {}]
  %s12 = inlined_call_operand.hbm [shape: f32[16,32], index: 12, kind: output, shape index: {}]
  %s13 = sld [smem:[#allocation0]]
  $region81: #{tpu_custom_call.1} parent=0
    _
  %s15 = ssub.s32 1, %s13
  %s16 = scalar_select 0, %s15, %s13
  $region1: #{tpu_custom_call.1} parent=0
    #allocation3 [shape = 'u8[8192]{0}', space=vmem, size = 0x2000, scoped, tag = 'output window, operand 0']
    #allocation4 [shape = 's32[2]{0}', space=sflag, size = 0x8, scoped, tag = 'scoped memory for tpu_custom_call.1']
    %17 = vsyncpa [#allocation4], 0
    %s18 = scalar_lea.sflag [#allocation4], 1
    %19 = vsyncpa %s18, 0
    loop: start=0, step=1, limit=4
    $region2: #{tpu_custom_call.1} parent=1 // loop_pre_header
      _
    $region3: #{tpu_custom_call.1} parent=1 // loop_header
      %s21 = sphi 0, %s25
      %p22 = scmp.ge.s32.totalorder %s21, 4
      %s31 = sphi 0, %s33
      %s34 = sphi 0, %s31
      %s35 = sphi 0, %s34
      %s51 = sphi 0, %s35
      %s55 = sphi 0, %s55
      %s57 = sphi 0, %s55
      %s58 = sphi 0, %s57
      %s72 = sphi 0, %s58
      %s76 = sphi 0, %s76
      %s78 = sphi 0, %s76
      %s79 = sphi 0, %s78
      %s93 = sphi 0, %s79
      %s97 = sphi 0, %s97
      %s99 = sphi 0, %s97
      %s100 = sphi 0, %s99
      %s114 = sphi 0, %s100
      %s118 = sphi 0, %s118
      %s120 = sphi 0, %s118
      %s121 = sphi 0, %s120
      %s135 = sphi 0, %s121
      %s139 = sphi 0, %s139
      %s141 = sphi 0, %s139
      %s142 = sphi 0, %s141
      %s156 = sphi 0, %s142
      %s160 = sphi 0, %s160
      %s162 = sphi 0, %s160
      %s163 = sphi 0, %s162
      %s177 = sphi 0, %s163
      %s181 = sphi 0, %s181
      %s183 = sphi 0, %s181
      %s184 = sphi 0, %s183
      %s198 = sphi 0, %s184
      %s202 = sphi 0, %s202
      %s204 = sphi 0, %s202
      %s205 = sphi 0, %s204
      %s219 = sphi 0, %s205
      %s223 = sphi 0, %s223
      %s225 = sphi 0, %s223
      %s226 = sphi 0, %s225
      %s240 = sphi 0, %s226
      %s244 = sphi 0, %s244
      %s246 = sphi 0, %s244
      %s247 = sphi 0, %s246
      %s261 = sphi 0, %s247
      %s265 = sphi 0, %s265
      %s267 = sphi 0, %s265
      %s268 = sphi 0, %s267
      %s282 = sphi 0, %s268
      %s288 = sphi 0, %s290
      %s291 = sphi 0, %s288
      %s292 = sphi 0, %s291
      %s308 = sphi 0, %s292
    $region4: #{tpu_custom_call.1} parent=1 // loop_header_branch
      %24 = sbr.rel (%p22) target = $region8
    $region5: #{tpu_custom_call.1} parent=1 // loop_body
      %s26 = ssub.s32 %s21, 1
      %s27 = ssub.s32 %s21, 2
      %s28 = sadd.s32 %s21, 1
      %s29 = ssub.s32 %s21, %s28
      %p30 = scmp.eq.s32.totalorder %s29, 0
      %s32 = sadd.s32 %s31, 1
      %s33 = scalar_select %p30, %s31, %s32
      %p36 = pneg %p30
      %p37 = scmp.eq.s32.totalorder %s21, 1
      %p38 = por %p36, %p37
      %p39 = scmp.ne.s32.totalorder %s31, %s34
      %p40 = scmp.eq.s32.totalorder %s21, 0
      %p41 = por %p39, %p40
      %p42 = scmp.ne.s32.totalorder %s31, %s34
      %p43 = scmp.eq.s32.totalorder %s26, 1
      %p44 = por %p42, %p43
      %p45 = scmp.ne.s32.totalorder %s34, %s35
      %p46 = scmp.eq.s32.totalorder %s26, 0
      %p47 = por %p45, %p46
      %p48 = scmp.ne.s32.totalorder %s34, %s35
      %p49 = scmp.eq.s32.totalorder %s27, 1
      %p50 = por %p48, %p49
      %p52 = scmp.ne.s32.totalorder %s35, %s51
      %p53 = scmp.eq.s32.totalorder %s27, 0
      %p54 = por %p52, %p53
      %s56 = sadd.s32 %s55, 1
      %p59 = scmp.eq.s32.totalorder %s21, 1
      %p60 = scmp.ne.s32.totalorder %s55, %s57
      %p61 = scmp.eq.s32.totalorder %s21, 0
      %p62 = por %p60, %p61
      %p63 = scmp.ne.s32.totalorder %s55, %s57
      %p64 = scmp.eq.s32.totalorder %s26, 1
      %p65 = por %p63, %p64
      %p66 = scmp.ne.s32.totalorder %s57, %s58
      %p67 = scmp.eq.s32.totalorder %s26, 0
      %p68 = por %p66, %p67
      %p69 = scmp.ne.s32.totalorder %s57, %s58
      %p70 = scmp.eq.s32.totalorder %s27, 1
      %p71 = por %p69, %p70
      %p73 = scmp.ne.s32.totalorder %s58, %s72
      %p74 = scmp.eq.s32.totalorder %s27, 0
      %p75 = por %p73, %p74
      %s77 = sadd.s32 %s76, 1
      %p80 = scmp.eq.s32.totalorder %s21, 1
      %p81 = scmp.ne.s32.totalorder %s76, %s78
      %p82 = scmp.eq.s32.totalorder %s21, 0
      %p83 = por %p81, %p82
      %p84 = scmp.ne.s32.totalorder %s76, %s78
      %p85 = scmp.eq.s32.totalorder %s26, 1
      %p86 = por %p84, %p85
      %p87 = scmp.ne.s32.totalorder %s78, %s79
      %p88 = scmp.eq.s32.totalorder %s26, 0
      %p89 = por %p87, %p88
      %p90 = scmp.ne.s32.totalorder %s78, %s79
      %p91 = scmp.eq.s32.totalorder %s27, 1
      %p92 = por %p90, %p91
      %p94 = scmp.ne.s32.totalorder %s79, %s93
      %p95 = scmp.eq.s32.totalorder %s27, 0
      %p96 = por %p94, %p95
      %s98 = sadd.s32 %s97, 1
      %p101 = scmp.eq.s32.totalorder %s21, 1
      %p102 = scmp.ne.s32.totalorder %s97, %s99
      %p103 = scmp.eq.s32.totalorder %s21, 0
      %p104 = por %p102, %p103
      %p105 = scmp.ne.s32.totalorder %s97, %s99
      %p106 = scmp.eq.s32.totalorder %s26, 1
      %p107 = por %p105, %p106
      %p108 = scmp.ne.s32.totalorder %s99, %s100
      %p109 = scmp.eq.s32.totalorder %s26, 0
      %p110 = por %p108, %p109
      %p111 = scmp.ne.s32.totalorder %s99, %s100
      %p112 = scmp.eq.s32.totalorder %s27, 1
      %p113 = por %p111, %p112
      %p115 = scmp.ne.s32.totalorder %s100, %s114
      %p116 = scmp.eq.s32.totalorder %s27, 0
      %p117 = por %p115, %p116
      %s119 = sadd.s32 %s118, 1
      %p122 = scmp.eq.s32.totalorder %s21, 1
      %p123 = scmp.ne.s32.totalorder %s118, %s120
      %p124 = scmp.eq.s32.totalorder %s21, 0
      %p125 = por %p123, %p124
      %p126 = scmp.ne.s32.totalorder %s118, %s120
      %p127 = scmp.eq.s32.totalorder %s26, 1
      %p128 = por %p126, %p127
      %p129 = scmp.ne.s32.totalorder %s120, %s121
      %p130 = scmp.eq.s32.totalorder %s26, 0
      %p131 = por %p129, %p130
      %p132 = scmp.ne.s32.totalorder %s120, %s121
      %p133 = scmp.eq.s32.totalorder %s27, 1
      %p134 = por %p132, %p133
      %p136 = scmp.ne.s32.totalorder %s121, %s135
      %p137 = scmp.eq.s32.totalorder %s27, 0
      %p138 = por %p136, %p137
      %s140 = sadd.s32 %s139, 1
      %p143 = scmp.eq.s32.totalorder %s21, 1
      %p144 = scmp.ne.s32.totalorder %s139, %s141
      %p145 = scmp.eq.s32.totalorder %s21, 0
      %p146 = por %p144, %p145
      %p147 = scmp.ne.s32.totalorder %s139, %s141
      %p148 = scmp.eq.s32.totalorder %s26, 1
      %p149 = por %p147, %p148
      %p150 = scmp.ne.s32.totalorder %s141, %s142
      %p151 = scmp.eq.s32.totalorder %s26, 0
      %p152 = por %p150, %p151
      %p153 = scmp.ne.s32.totalorder %s141, %s142
      %p154 = scmp.eq.s32.totalorder %s27, 1
      %p155 = por %p153, %p154
      %p157 = scmp.ne.s32.totalorder %s142, %s156
      %p158 = scmp.eq.s32.totalorder %s27, 0
      %p159 = por %p157, %p158
      %s161 = sadd.s32 %s160, 1
      %p164 = scmp.eq.s32.totalorder %s21, 1
      %p165 = scmp.ne.s32.totalorder %s160, %s162
      %p166 = scmp.eq.s32.totalorder %s21, 0
      %p167 = por %p165, %p166
      %p168 = scmp.ne.s32.totalorder %s160, %s162
      %p169 = scmp.eq.s32.totalorder %s26, 1
      %p170 = por %p168, %p169
      %p171 = scmp.ne.s32.totalorder %s162, %s163
      %p172 = scmp.eq.s32.totalorder %s26, 0
      %p173 = por %p171, %p172
      %p174 = scmp.ne.s32.totalorder %s162, %s163
      %p175 = scmp.eq.s32.totalorder %s27, 1
      %p176 = por %p174, %p175
      %p178 = scmp.ne.s32.totalorder %s163, %s177
      %p179 = scmp.eq.s32.totalorder %s27, 0
      %p180 = por %p178, %p179
      %s182 = sadd.s32 %s181, 1
      %p185 = scmp.eq.s32.totalorder %s21, 1
      %p186 = scmp.ne.s32.totalorder %s181, %s183
      %p187 = scmp.eq.s32.totalorder %s21, 0
      %p188 = por %p186, %p187
      %p189 = scmp.ne.s32.totalorder %s181, %s183
      %p190 = scmp.eq.s32.totalorder %s26, 1
      %p191 = por %p189, %p190
      %p192 = scmp.ne.s32.totalorder %s183, %s184
      %p193 = scmp.eq.s32.totalorder %s26, 0
      %p194 = por %p192, %p193
      %p195 = scmp.ne.s32.totalorder %s183, %s184
      %p196 = scmp.eq.s32.totalorder %s27, 1
      %p197 = por %p195, %p196
      %p199 = scmp.ne.s32.totalorder %s184, %s198
      %p200 = scmp.eq.s32.totalorder %s27, 0
      %p201 = por %p199, %p200
      %s203 = sadd.s32 %s202, 1
      %p206 = scmp.eq.s32.totalorder %s21, 1
      %p207 = scmp.ne.s32.totalorder %s202, %s204
      %p208 = scmp.eq.s32.totalorder %s21, 0
      %p209 = por %p207, %p208
      %p210 = scmp.ne.s32.totalorder %s202, %s204
      %p211 = scmp.eq.s32.totalorder %s26, 1
      %p212 = por %p210, %p211
      %p213 = scmp.ne.s32.totalorder %s204, %s205
      %p214 = scmp.eq.s32.totalorder %s26, 0
      %p215 = por %p213, %p214
      %p216 = scmp.ne.s32.totalorder %s204, %s205
      %p217 = scmp.eq.s32.totalorder %s27, 1
      %p218 = por %p216, %p217
      %p220 = scmp.ne.s32.totalorder %s205, %s219
      %p221 = scmp.eq.s32.totalorder %s27, 0
      %p222 = por %p220, %p221
      %s224 = sadd.s32 %s223, 1
      %p227 = scmp.eq.s32.totalorder %s21, 1
      %p228 = scmp.ne.s32.totalorder %s223, %s225
      %p229 = scmp.eq.s32.totalorder %s21, 0
      %p230 = por %p228, %p229
      %p231 = scmp.ne.s32.totalorder %s223, %s225
      %p232 = scmp.eq.s32.totalorder %s26, 1
      %p233 = por %p231, %p232
      %p234 = scmp.ne.s32.totalorder %s225, %s226
      %p235 = scmp.eq.s32.totalorder %s26, 0
      %p236 = por %p234, %p235
      %p237 = scmp.ne.s32.totalorder %s225, %s226
      %p238 = scmp.eq.s32.totalorder %s27, 1
      %p239 = por %p237, %p238
      %p241 = scmp.ne.s32.totalorder %s226, %s240
      %p242 = scmp.eq.s32.totalorder %s27, 0
      %p243 = por %p241, %p242
      %s245 = sadd.s32 %s244, 1
      %p248 = scmp.eq.s32.totalorder %s21, 1
      %p249 = scmp.ne.s32.totalorder %s244, %s246
      %p250 = scmp.eq.s32.totalorder %s21, 0
      %p251 = por %p249, %p250
      %p252 = scmp.ne.s32.totalorder %s244, %s246
      %p253 = scmp.eq.s32.totalorder %s26, 1
      %p254 = por %p252, %p253
      %p255 = scmp.ne.s32.totalorder %s246, %s247
      %p256 = scmp.eq.s32.totalorder %s26, 0
      %p257 = por %p255, %p256
      %p258 = scmp.ne.s32.totalorder %s246, %s247
      %p259 = scmp.eq.s32.totalorder %s27, 1
      %p260 = por %p258, %p259
      %p262 = scmp.ne.s32.totalorder %s247, %s261
      %p263 = scmp.eq.s32.totalorder %s27, 0
      %p264 = por %p262, %p263
      %s266 = sadd.s32 %s265, 1
      %p269 = scmp.eq.s32.totalorder %s21, 1
      %p270 = scmp.ne.s32.totalorder %s265, %s267
      %p271 = scmp.eq.s32.totalorder %s21, 0
      %p272 = por %p270, %p271
      %p273 = scmp.ne.s32.totalorder %s265, %s267
      %p274 = scmp.eq.s32.totalorder %s26, 1
      %p275 = por %p273, %p274
      %p276 = scmp.ne.s32.totalorder %s267, %s268
      %p277 = scmp.eq.s32.totalorder %s26, 0
      %p278 = por %p276, %p277
      %p279 = scmp.ne.s32.totalorder %s267, %s268
      %p280 = scmp.eq.s32.totalorder %s27, 1
      %p281 = por %p279, %p280
      %p283 = scmp.ne.s32.totalorder %s268, %s282
      %p284 = scmp.eq.s32.totalorder %s27, 0
      %p285 = por %p283, %p284
      %s286 = ssub.s32 %s21, %s28
      %p287 = scmp.eq.s32.totalorder %s286, 0
      %s289 = sadd.s32 %s288, 1
      %s290 = scalar_select %p287, %s288, %s289
      %p293 = pneg %p287
      %p294 = scmp.eq.s32.totalorder %s21, 1
      %p295 = por %p293, %p294
      %p296 = scmp.ne.s32.totalorder %s288, %s291
      %p297 = scmp.eq.s32.totalorder %s21, 0
      %p298 = por %p296, %p297
      %p299 = scmp.ne.s32.totalorder %s288, %s291
      %p300 = scmp.eq.s32.totalorder %s26, 1
      %p301 = por %p299, %p300
      %p302 = scmp.ne.s32.totalorder %s291, %s292
      %p303 = scmp.eq.s32.totalorder %s26, 0
      %p304 = por %p302, %p303
      %p305 = scmp.ne.s32.totalorder %s291, %s292
      %p306 = scmp.eq.s32.totalorder %s27, 1
      %p307 = por %p305, %p306
      %p309 = scmp.ne.s32.totalorder %s292, %s308
      %p310 = scmp.eq.s32.totalorder %s27, 0
      %p311 = por %p309, %p310
      %p312 = scmp.le.s32.totalorder 1, %s21
      %p313 = scmp.lt.s32.totalorder %s21, 3
      %p314 = pnand %p312, %p313
      %p315 = pneg %p314
      // Predicated region
      $region9: #{tpu_custom_call.1} parent=5 // pred_check
        _
      $region10: #{tpu_custom_call.1} parent=5 // pred_check_branch
        %317 = sbr.rel (%p314) target = $region12
      $region11: #{tpu_custom_call.1} parent=5 // pred_region
        %s318 = ssub.s32 %s21, 1
        // Predicated region
        $region13: #{tpu_custom_call.1} parent=11 // pred_check
          %p319 = pneg %p68
        $region14: #{tpu_custom_call.1} parent=11 // pred_check_branch
          %321 = sbr.rel (%p319) target = $region16
        $region15: #{tpu_custom_call.1} parent=11 // pred_region
          _
        $region16: #{tpu_custom_call.1} parent=11 // pred_fallthru
          _
        // Predicated region
        $region17: #{tpu_custom_call.1} parent=11 // pred_check
          %p322 = pneg %p89
        $region18: #{tpu_custom_call.1} parent=11 // pred_check_branch
          %324 = sbr.rel (%p322) target = $region20
        $region19: #{tpu_custom_call.1} parent=11 // pred_region
          _
        $region20: #{tpu_custom_call.1} parent=11 // pred_fallthru
          _
        // Predicated region
        $region21: #{tpu_custom_call.1} parent=11 // pred_check
          %p325 = pneg %p110
        $region22: #{tpu_custom_call.1} parent=11 // pred_check_branch
          %327 = sbr.rel (%p325) target = $region24
        $region23: #{tpu_custom_call.1} parent=11 // pred_region
          _
        $region24: #{tpu_custom_call.1} parent=11 // pred_fallthru
          _
        // Predicated region
        $region25: #{tpu_custom_call.1} parent=11 // pred_check
          %p328 = pneg %p131
        $region26: #{tpu_custom_call.1} parent=11 // pred_check_branch
          %330 = sbr.rel (%p328) target = $region28
        $region27: #{tpu_custom_call.1} parent=11 // pred_region
          _
        $region28: #{tpu_custom_call.1} parent=11 // pred_fallthru
          _
        // Predicated region
        $region29: #{tpu_custom_call.1} parent=11 // pred_check
          %p331 = pneg %p152
        $region30: #{tpu_custom_call.1} parent=11 // pred_check_branch
          %333 = sbr.rel (%p331) target = $region32
        $region31: #{tpu_custom_call.1} parent=11 // pred_region
          _
        $region32: #{tpu_custom_call.1} parent=11 // pred_fallthru
          _
        // Predicated region
        $region33: #{tpu_custom_call.1} parent=11 // pred_check
          %p334 = pneg %p173
        $region34: #{tpu_custom_call.1} parent=11 // pred_check_branch
          %336 = sbr.rel (%p334) target = $region36
        $region35: #{tpu_custom_call.1} parent=11 // pred_region
          _
        $region36: #{tpu_custom_call.1} parent=11 // pred_fallthru
          _
        // Predicated region
        $region37: #{tpu_custom_call.1} parent=11 // pred_check
          %p337 = pneg %p194
        $region38: #{tpu_custom_call.1} parent=11 // pred_check_branch
          %339 = sbr.rel (%p337) target = $region40
        $region39: #{tpu_custom_call.1} parent=11 // pred_region
          _
        $region40: #{tpu_custom_call.1} parent=11 // pred_fallthru
          _
        // Predicated region
        $region41: #{tpu_custom_call.1} parent=11 // pred_check
          %p340 = pneg %p215
        $region42: #{tpu_custom_call.1} parent=11 // pred_check_branch
          %342 = sbr.rel (%p340) target = $region44
        $region43: #{tpu_custom_call.1} parent=11 // pred_region
          _
        $region44: #{tpu_custom_call.1} parent=11 // pred_fallthru
          _
        // Predicated region
        $region45: #{tpu_custom_call.1} parent=11 // pred_check
          %p343 = pneg %p236
        $region46: #{tpu_custom_call.1} parent=11 // pred_check_branch
          %345 = sbr.rel (%p343) target = $region48
        $region47: #{tpu_custom_call.1} parent=11 // pred_region
          _
        $region48: #{tpu_custom_call.1} parent=11 // pred_fallthru
          _
        // Predicated region
        $region49: #{tpu_custom_call.1} parent=11 // pred_check
          %p346 = pneg %p257
        $region50: #{tpu_custom_call.1} parent=11 // pred_check_branch
          %348 = sbr.rel (%p346) target = $region52
        $region51: #{tpu_custom_call.1} parent=11 // pred_region
          _
        $region52: #{tpu_custom_call.1} parent=11 // pred_fallthru
          _
        // Predicated region
        $region53: #{tpu_custom_call.1} parent=11 // pred_check
          %p349 = pneg %p278
        $region54: #{tpu_custom_call.1} parent=11 // pred_check_branch
          %351 = sbr.rel (%p349) target = $region56
        $region55: #{tpu_custom_call.1} parent=11 // pred_region
          _
        $region56: #{tpu_custom_call.1} parent=11 // pred_fallthru
          _
      $region12: #{tpu_custom_call.1} parent=5 // pred_fallthru
        _
      %p352 = scmp.lt.s32.totalorder %s21, 2
      // Predicated region
      $region57: #{tpu_custom_call.1} parent=5 // pred_check
        %p353 = pneg %p352
      $region58: #{tpu_custom_call.1} parent=5 // pred_check_branch
        %355 = sbr.rel (%p353) target = $region60
      $region59: #{tpu_custom_call.1} parent=5 // pred_region
        // Predicated region
        $region61: #{tpu_custom_call.1} parent=59 // pred_check
          %p356 = pneg %p41
        $region62: #{tpu_custom_call.1} parent=59 // pred_check_branch
          %358 = sbr.rel (%p356) target = $region64
        $region63: #{tpu_custom_call.1} parent=59 // pred_region
          %p359 = scmp.lt.s32.totalorder %s21, 1
          %s360 = scalar_select %p359, %s21, 1
          %s361 = smul.addr %s360, 8
          %s362 = scalar_lea.vmem %s0, %s361
        $region64: #{tpu_custom_call.1} parent=59 // pred_fallthru
          _
      $region60: #{tpu_custom_call.1} parent=5 // pred_fallthru
        _
      %p363 = scmp.le.s32.totalorder 1, %s21
      %p364 = scmp.lt.s32.totalorder %s21, 3
      %p365 = pnand %p363, %p364
      %p366 = pneg %p365
      // Predicated region
      $region65: #{tpu_custom_call.1} parent=5 // pred_check
        _
      $region66: #{tpu_custom_call.1} parent=5 // pred_check_branch
        %368 = sbr.rel (%p365) target = $region68
      $region67: #{tpu_custom_call.1} parent=5 // pred_region
        %s369 = ssub.s32 %s21, 1
        %p370 = scmp.lt.s32.totalorder %s26, 1
        %s371 = scalar_select %p370, %s26, 1
        %s372 = smul.addr %s371, 8
        %s373 = scalar_lea.vmem %s0, %s372
        %p374 = pneg %p47
        %p375 = pneg %p44
        %p376 = pneg %p68
        %p377 = pneg %p65
        %p378 = pneg %p89
        %p379 = pneg %p86
        %p380 = pneg %p110
        %p381 = pneg %p107
        %p382 = pneg %p131
        %p383 = pneg %p128
        %p384 = pneg %p152
        %p385 = pneg %p149
        %p386 = pneg %p173
        %p387 = pneg %p170
        %p388 = pneg %p194
        %p389 = pneg %p191
        %p390 = pneg %p215
        %p391 = pneg %p212
        %p392 = pneg %p236
        %p393 = pneg %p233
        %p394 = pneg %p257
        %p395 = pneg %p254
        %p396 = pneg %p278
        %p397 = pneg %p275
        %p398 = pneg %p304
        %p399 = pneg %p301
        %s400 = sand.u32 %s291, 1
        %s401 = scalar_lea.sflag [#allocation4], %s400
        %s402 = sand.u32 %s291, 1
        %s403 = smul.addr %s402, 8
        %s404 = scalar_lea.vmem [#allocation3], %s403
        %p405 = scmp.lt.s32.totalorder %s26, 1
        %s406 = scalar_select %p405, %s26, 1
        %s407 = smul.addr %s406, 8
        %s408 = scalar_lea.vmem %s0, %s407
        %v410 = vld [vmem:[%s408] sm:$0xff]
        %vm411 = vcmask 261120
        %v412 = vsel %vm411, %v410, 0.0
        %413 = vadd.xlane.f32.xlu0 %v412
        %v414 = vpop.xlane.xlu0 %413
        %v415 = vrcp.pop 32.0
        %v416 = vmul.f32 %v414, %v415
        %v417 = vsub.f32 %v410, %v416
        %v418 = vmul.f32 %v417, %v417
        %v419 = vsel %vm411, %v418, 0.0
        %420 = vadd.xlane.f32.xlu0 %v419
        %v421 = vpop.xlane.xlu0 %420
        %v422 = vmul.f32 %v421, %v415
        %v423 = vadd.f32 %v422, 1e-05
        %v424 = vrsqrt.pop %v423
        %v425 = vmul.f32 %v417, %v424
        %v426 = vld [vmem:[%s1] sm:$0x1]
        %v428 = vlaneseq
        %v429 = vshrl.u32 %v428, 7
        %v430 = vsub.s32 0, %v429
        %v431 = vrot.slane %v426, %v430
        %v433 = vmul.f32 %v425, %v431
        %v434 = vld [vmem:[%s2] sm:$0x1]
        %v436 = vlaneseq
        %v437 = vshrl.u32 %v436, 7
        %v438 = vsub.s32 0, %v437
        %v439 = vrot.slane %v434, %v438
        %v441 = vadd.f32 %v433, %v439
        %v442 = vpack.c.bf16 %v441, %v441
        %v443 = vld [vmem:[%s3] sm:$0xf]
        %v444 = vld [vmem:[%s3 + $0x4] sm:$0xf]
        %v445 = vld [vmem:[%s3 + $0x8] sm:$0xf]
        %v446 = vld [vmem:[%s3 + $0xc] sm:$0xf]
        %v451 = vunpack.c.l.b16 %v443
        %v452 = vunpack.c.l.b16 %v444
        %v453 = vunpack.c.l.b16 %v445
        %v454 = vunpack.c.l.b16 %v446
        %v455 = vpack.c.b16 %v452, %v451
        %v456 = vpack.c.b16 %v454, %v453
        %v460 = vsel %vm411, %v442, 0
        %462 = vmatprep.subr.bf16.mxu0 0
        %463 = vmatpush1.bf16.msra.mxu0 0
        %464 = vmatprep.subr.bf16.mxu0 0
        %465 = vmatpush1.bf16.msra.mxu0 0
        %466 = vmatprep.subr.bf16.mxu0 0
        %467 = vmatpush1.bf16.msra.mxu0 0
        %468 = vmatprep.subr.bf16.mxu0 0
        %469 = vmatpush1.bf16.msra.mxu0 0
        %470 = vmatprep.subr.bf16.mxu0 0
        %471 = vmatpush1.bf16.msra.mxu0 0
        %472 = vmatprep.subr.bf16.mxu0 0
        %473 = vmatpush1.bf16.msra.mxu0 0
        %474 = vmatprep.subr.bf16.mxu0 0
        %475 = vmatpush1.bf16.msra.mxu0 %v456
        %476 = vmatprep.subr.bf16.mxu0 0
        %477 = vmatpush1.bf16.msra.mxu0 %v455
        %478 = vmatprep.subr.bf16.mxu0 0
        %479 = vmatpush2.bf16.msra.mxu0 0
        %480 = vmatprep.subr.bf16.mxu0 0
        %481 = vmatpush2.bf16.msra.mxu0 0
        %482 = vmatprep.subr.bf16.mxu0 0
        %483 = vmatpush2.bf16.msra.mxu0 0
        %484 = vmatprep.subr.bf16.mxu0 0
        %485 = vmatpush2.bf16.msra.mxu0 0
        %486 = vmatprep.subr.bf16.mxu0 0
        %487 = vmatpush2.bf16.msra.mxu0 0
        %488 = vmatprep.subr.bf16.mxu0 0
        %489 = vmatpush2.bf16.msra.mxu0 0
        %490 = vmatprep.subr.bf16.mxu0 0
        %491 = vmatpush2.bf16.msra.mxu0 0
        %492 = vmatprep.subr.bf16.mxu0 0
        %493 = vmatpush2.bf16.msra.mxu0 0
        %494 = vmatprep.mubr.bf16.mxu0 0
        %495 = vmatmul.mubr.bf16.gmra.mxu0 %v460
        %v496 = vpop.f32.mrf.mxu0
        %v497 = vadd.f32 0.0, %v496
        %v498 = vpop.f32.mrf.mxu0
        %v499 = vpop.f32.mrf.mxu0
        %v500 = vpop.f32.mrf.mxu0
        %501 = vdwg.mxu0
        %v502 = vlaneseq
        %v503 = vshrl.u32 %v502, 7
        %v504 = vlaneseq
        %v505 = vand.u32 %v504, 127
        %vm506 = vcmp.le.s32.totalorder %v505, %v503
        %v507 = vpack.c.bf16 %v497, %v497
        %509 = vrot.lane.b32.xlu0 %v507, 96
        %v510 = vpop.permute.xlu0 %509
        %vm511 = vcmask 64512
        %v513 = vsel %vm511, %v507, 0
        %v516 = vsel %vm511, %v510, 0
        %518 = vmatprep.subr.bf16.mxu0 0
        %519 = vmatpush1.bf16.xpose.msra.mxu0 0
        %520 = vmatprep.subr.bf16.mxu0 0
        %521 = vmatpush1.bf16.xpose.msra.mxu0 0
        %522 = vmatprep.subr.bf16.mxu0 0
        %523 = vmatpush1.bf16.xpose.msra.mxu0 0
        %524 = vmatprep.subr.bf16.mxu0 0
        %525 = vmatpush1.bf16.xpose.msra.mxu0 0
        %526 = vmatprep.subr.bf16.mxu0 0
        %527 = vmatpush1.bf16.xpose.msra.mxu0 0
        %528 = vmatprep.subr.bf16.mxu0 0
        %529 = vmatpush1.bf16.xpose.msra.mxu0 0
        %530 = vmatprep.subr.bf16.mxu0 0
        %531 = vmatpush1.bf16.xpose.msra.mxu0 0
        %532 = vmatprep.subr.bf16.mxu0 0
        %533 = vmatpush1.bf16.xpose.msra.mxu0 %v516
        %534 = vmatprep.subr.bf16.mxu0 0
        %535 = vmatpush2.bf16.xpose.msra.mxu0 0
        %536 = vmatprep.subr.bf16.mxu0 0
        %537 = vmatpush2.bf16.xpose.msra.mxu0 0
        %538 = vmatprep.subr.bf16.mxu0 0
        %539 = vmatpush2.bf16.xpose.msra.mxu0 0
        %540 = vmatprep.subr.bf16.mxu0 0
        %541 = vmatpush2.bf16.xpose.msra.mxu0 0
        %542 = vmatprep.subr.bf16.mxu0 0
        %543 = vmatpush2.bf16.xpose.msra.mxu0 0
        %544 = vmatprep.subr.bf16.mxu0 0
        %545 = vmatpush2.bf16.xpose.msra.mxu0 0
        %546 = vmatprep.subr.bf16.mxu0 0
        %547 = vmatpush2.bf16.xpose.msra.mxu0 0
        %548 = vmatprep.subr.bf16.mxu0 0
        %549 = vmatpush2.bf16.xpose.msra.mxu0 0
        %550 = vmatprep.mubr.bf16.mxu0 0
        %551 = vmatmul.mubr.bf16.gmra.mxu0 %v513
        %v552 = vpop.f32.mrf.mxu0
        %v553 = vadd.f32 0.0, %v552
        %v554 = vpop.f32.mrf.mxu0
        %v555 = vpop.f32.mrf.mxu0
        %v556 = vpop.f32.mrf.mxu0
        %557 = vdwg.mxu0
        %v558 = vsel %vm506, %v553, -1e+30
        %v559 = vsel %vm511, %v558, -inf
        %560 = vmax.xlane.f32.xlu0 %v559
        %v561 = vpop.xlane.xlu0 %560
        %v562 = vsub.f32 %v558, %v561
        %v563 = vmul.f32 %v562, 1.442695
        %v564 = vpow.pop %v563
        %v565 = vsel %vm511, %v564, 0.0
        %566 = vadd.xlane.f32.xlu0 %v565
        %v567 = vpop.xlane.xlu0 %566
        %v568 = vrcp.pop %v567
        %v569 = vmul.f32 %v564, %v568
        %v570 = vpack.c.bf16 %v569, %v569
        %571 = vrot.lane.b32.xlu0 %v507, 64
        %v572 = vpop.permute.xlu0 %571
        %v574 = vsel %vm511, %v570, 0
        %vm576 = vcmask 1043456
        %v578 = vsel %vm576, %v572, 0
        %580 = vmatprep.subr.bf16.mxu0 0
        %581 = vmatpush1.bf16.msra.mxu0 0
        %582 = vmatprep.subr.bf16.mxu0 0
        %583 = vmatpush1.bf16.msra.mxu0 0
        %584 = vmatprep.subr.bf16.mxu0 0
        %585 = vmatpush1.bf16.msra.mxu0 0
        %586 = vmatprep.subr.bf16.mxu0 0
        %587 = vmatpush1.bf16.msra.mxu0 0
        %588 = vmatprep.subr.bf16.mxu0 0
        %589 = vmatpush1.bf16.msra.mxu0 0
        %590 = vmatprep.subr.bf16.mxu0 0
        %591 = vmatpush1.bf16.msra.mxu0 0
        %592 = vmatprep.subr.bf16.mxu0 0
        %593 = vmatpush1.bf16.msra.mxu0 0
        %594 = vmatprep.subr.bf16.mxu0 0
        %595 = vmatpush1.bf16.msra.mxu0 %v578
        %596 = vmatprep.subr.bf16.mxu0 0
        %597 = vmatpush2.bf16.msra.mxu0 0
        %598 = vmatprep.subr.bf16.mxu0 0
        %599 = vmatpush2.bf16.msra.mxu0 0
        %600 = vmatprep.subr.bf16.mxu0 0
        %601 = vmatpush2.bf16.msra.mxu0 0
        %602 = vmatprep.subr.bf16.mxu0 0
        %603 = vmatpush2.bf16.msra.mxu0 0
        %604 = vmatprep.subr.bf16.mxu0 0
        %605 = vmatpush2.bf16.msra.mxu0 0
        %606 = vmatprep.subr.bf16.mxu0 0
        %607 = vmatpush2.bf16.msra.mxu0 0
        %608 = vmatprep.subr.bf16.mxu0 0
        %609 = vmatpush2.bf16.msra.mxu0 0
        %610 = vmatprep.subr.bf16.mxu0 0
        %611 = vmatpush2.bf16.msra.mxu0 0
        %612 = vmatprep.mubr.bf16.mxu0 0
        %613 = vmatmul.mubr.bf16.gmra.mxu0 %v574
        %v614 = vpop.f32.mrf.mxu0
        %v615 = vadd.f32 0.0, %v614
        %v616 = vpop.f32.mrf.mxu0
        %v617 = vpop.f32.mrf.mxu0
        %v618 = vpop.f32.mrf.mxu0
        %619 = vdwg.mxu0
        %v620 = vpack.c.bf16 %v615, %v615
        %vm621 = vcmask 60416
        %622 = vst.msk [vmem:[#allocation2] sm:$0xf] %vm621, %v620
        %623 = vrot.lane.b32.xlu0 %v507, 120
        %v624 = vpop.permute.xlu0 %623
        %625 = vrot.lane.b32.xlu0 %v507, 88
        %v626 = vpop.permute.xlu0 %625
        %v628 = vsel %vm511, %v624, 0
        %v631 = vsel %vm511, %v626, 0
        %633 = vmatprep.subr.bf16.mxu0 0
        %634 = vmatpush1.bf16.xpose.msra.mxu0 0
        %635 = vmatprep.subr.bf16.mxu0 0
        %636 = vmatpush1.bf16.xpose.msra.mxu0 0
        %637 = vmatprep.subr.bf16.mxu0 0
        %638 = vmatpush1.bf16.xpose.msra.mxu0 0
        %639 = vmatprep.subr.bf16.mxu0 0
        %640 = vmatpush1.bf16.xpose.msra.mxu0 0
        %641 = vmatprep.subr.bf16.mxu0 0
        %642 = vmatpush1.bf16.xpose.msra.mxu0 0
        %643 = vmatprep.subr.bf16.mxu0 0
        %644 = vmatpush1.bf16.xpose.msra.mxu0 0
        %645 = vmatprep.subr.bf16.mxu0 0
        %646 = vmatpush1.bf16.xpose.msra.mxu0 0
        %647 = vmatprep.subr.bf16.mxu0 0
        %648 = vmatpush1.bf16.xpose.msra.mxu0 %v631
        %649 = vmatprep.subr.bf16.mxu0 0
        %650 = vmatpush2.bf16.xpose.msra.mxu0 0
        %651 = vmatprep.subr.bf16.mxu0 0
        %652 = vmatpush2.bf16.xpose.msra.mxu0 0
        %653 = vmatprep.subr.bf16.mxu0 0
        %654 = vmatpush2.bf16.xpose.msra.mxu0 0
        %655 = vmatprep.subr.bf16.mxu0 0
        %656 = vmatpush2.bf16.xpose.msra.mxu0 0
        %657 = vmatprep.subr.bf16.mxu0 0
        %658 = vmatpush2.bf16.xpose.msra.mxu0 0
        %659 = vmatprep.subr.bf16.mxu0 0
        %660 = vmatpush2.bf16.xpose.msra.mxu0 0
        %661 = vmatprep.subr.bf16.mxu0 0
        %662 = vmatpush2.bf16.xpose.msra.mxu0 0
        %663 = vmatprep.subr.bf16.mxu0 0
        %664 = vmatpush2.bf16.xpose.msra.mxu0 0
        %665 = vmatprep.mubr.bf16.mxu0 0
        %666 = vmatmul.mubr.bf16.gmra.mxu0 %v628
        %v667 = vpop.f32.mrf.mxu0
        %v668 = vadd.f32 0.0, %v667
        %v669 = vpop.f32.mrf.mxu0
        %v670 = vpop.f32.mrf.mxu0
        %v671 = vpop.f32.mrf.mxu0
        %672 = vdwg.mxu0
        %v673 = vsel %vm506, %v668, -1e+30
        %v674 = vsel %vm511, %v673, -inf
        %675 = vmax.xlane.f32.xlu0 %v674
        %v676 = vpop.xlane.xlu0 %675
        %v677 = vsub.f32 %v673, %v676
        %v678 = vmul.f32 %v677, 1.442695
        %v679 = vpow.pop %v678
        %v680 = vsel %vm511, %v679, 0.0
        %681 = vadd.xlane.f32.xlu0 %v680
        %v682 = vpop.xlane.xlu0 %681
        %v683 = vrcp.pop %v682
        %v684 = vmul.f32 %v679, %v683
        %v685 = vpack.c.bf16 %v684, %v684
        %686 = vrot.lane.b32.xlu0 %v507, 56
        %v687 = vpop.permute.xlu0 %686
        %v689 = vsel %vm511, %v685, 0
        %v692 = vsel %vm576, %v687, 0
        %694 = vmatprep.subr.bf16.mxu0 0
        %695 = vmatpush1.bf16.msra.mxu0 0
        %696 = vmatprep.subr.bf16.mxu0 0
        %697 = vmatpush1.bf16.msra.mxu0 0
        %698 = vmatprep.subr.bf16.mxu0 0
        %699 = vmatpush1.bf16.msra.mxu0 0
        %700 = vmatprep.subr.bf16.mxu0 0
        %701 = vmatpush1.bf16.msra.mxu0 0
        %702 = vmatprep.subr.bf16.mxu0 0
        %703 = vmatpush1.bf16.msra.mxu0 0
        %704 = vmatprep.subr.bf16.mxu0 0
        %705 = vmatpush1.bf16.msra.mxu0 0
        %706 = vmatprep.subr.bf16.mxu0 0
        %707 = vmatpush1.bf16.msra.mxu0 0
        %708 = vmatprep.subr.bf16.mxu0 0
        %709 = vmatpush1.bf16.msra.mxu0 %v692
        %710 = vmatprep.subr.bf16.mxu0 0
        %711 = vmatpush2.bf16.msra.mxu0 0
        %712 = vmatprep.subr.bf16.mxu0 0
        %713 = vmatpush2.bf16.msra.mxu0 0
        %714 = vmatprep.subr.bf16.mxu0 0
        %715 = vmatpush2.bf16.msra.mxu0 0
        %716 = vmatprep.subr.bf16.mxu0 0
        %717 = vmatpush2.bf16.msra.mxu0 0
        %718 = vmatprep.subr.bf16.mxu0 0
        %719 = vmatpush2.bf16.msra.mxu0 0
        %720 = vmatprep.subr.bf16.mxu0 0
        %721 = vmatpush2.bf16.msra.mxu0 0
        %722 = vmatprep.subr.bf16.mxu0 0
        %723 = vmatpush2.bf16.msra.mxu0 0
        %724 = vmatprep.subr.bf16.mxu0 0
        %725 = vmatpush2.bf16.msra.mxu0 0
        %726 = vmatprep.mubr.bf16.mxu0 0
        %727 = vmatmul.mubr.bf16.gmra.mxu0 %v689
        %v728 = vpop.f32.mrf.mxu0
        %v729 = vadd.f32 0.0, %v728
        %v730 = vpop.f32.mrf.mxu0
        %v731 = vpop.f32.mrf.mxu0
        %v732 = vpop.f32.mrf.mxu0
        %733 = vdwg.mxu0
        %v734 = vpack.c.bf16 %v729, %v729
        %v736 = vunpack.c.l.b16 %v734
        %v737 = vpack.c.b16 %v736, %v736
        %738 = vrot.lane.b32.xlu0 %v737, 8
        %v739 = vpop.permute.xlu0 %738
        %vm741 = vcmask 126016
        %742 = vst.msk [vmem:[#allocation2] sm:$0xf] %vm741, %v739
        %743 = vrot.lane.b32.xlu0 %v507, 112
        %v744 = vpop.permute.xlu0 %743
        %745 = vrot.lane.b32.xlu0 %v507, 80
        %v746 = vpop.permute.xlu0 %745
        %v748 = vsel %vm511, %v744, 0
        %v751 = vsel %vm511, %v746, 0
        %753 = vmatprep.subr.bf16.mxu0 0
        %754 = vmatpush1.bf16.xpose.msra.mxu0 0
        %755 = vmatprep.subr.bf16.mxu0 0
        %756 = vmatpush1.bf16.xpose.msra.mxu0 0
        %757 = vmatprep.subr.bf16.mxu0 0
        %758 = vmatpush1.bf16.xpose.msra.mxu0 0
        %759 = vmatprep.subr.bf16.mxu0 0
        %760 = vmatpush1.bf16.xpose.msra.mxu0 0
        %761 = vmatprep.subr.bf16.mxu0 0
        %762 = vmatpush1.bf16.xpose.msra.mxu0 0
        %763 = vmatprep.subr.bf16.mxu0 0
        %764 = vmatpush1.bf16.xpose.msra.mxu0 0
        %765 = vmatprep.subr.bf16.mxu0 0
        %766 = vmatpush1.bf16.xpose.msra.mxu0 0
        %767 = vmatprep.subr.bf16.mxu0 0
        %768 = vmatpush1.bf16.xpose.msra.mxu0 %v751
        %769 = vmatprep.subr.bf16.mxu0 0
        %770 = vmatpush2.bf16.xpose.msra.mxu0 0
        %771 = vmatprep.subr.bf16.mxu0 0
        %772 = vmatpush2.bf16.xpose.msra.mxu0 0
        %773 = vmatprep.subr.bf16.mxu0 0
        %774 = vmatpush2.bf16.xpose.msra.mxu0 0
        %775 = vmatprep.subr.bf16.mxu0 0
        %776 = vmatpush2.bf16.xpose.msra.mxu0 0
        %777 = vmatprep.subr.bf16.mxu0 0
        %778 = vmatpush2.bf16.xpose.msra.mxu0 0
        %779 = vmatprep.subr.bf16.mxu0 0
        %780 = vmatpush2.bf16.xpose.msra.mxu0 0
        %781 = vmatprep.subr.bf16.mxu0 0
        %782 = vmatpush2.bf16.xpose.msra.mxu0 0
        %783 = vmatprep.subr.bf16.mxu0 0
        %784 = vmatpush2.bf16.xpose.msra.mxu0 0
        %785 = vmatprep.mubr.bf16.mxu0 0
        %786 = vmatmul.mubr.bf16.gmra.mxu0 %v748
        %v787 = vpop.f32.mrf.mxu0
        %v788 = vadd.f32 0.0, %v787
        %v789 = vpop.f32.mrf.mxu0
        %v790 = vpop.f32.mrf.mxu0
        %v791 = vpop.f32.mrf.mxu0
        %792 = vdwg.mxu0
        %v793 = vsel %vm506, %v788, -1e+30
        %v794 = vsel %vm511, %v793, -inf
        %795 = vmax.xlane.f32.xlu0 %v794
        %v796 = vpop.xlane.xlu0 %795
        %v797 = vsub.f32 %v793, %v796
        %v798 = vmul.f32 %v797, 1.442695
        %v799 = vpow.pop %v798
        %v800 = vsel %vm511, %v799, 0.0
        %801 = vadd.xlane.f32.xlu0 %v800
        %v802 = vpop.xlane.xlu0 %801
        %v803 = vrcp.pop %v802
        %v804 = vmul.f32 %v799, %v803
        %v805 = vpack.c.bf16 %v804, %v804
        %806 = vrot.lane.b32.xlu0 %v507, 48
        %v807 = vpop.permute.xlu0 %806
        %v809 = vsel %vm511, %v805, 0
        %v812 = vsel %vm576, %v807, 0
        %814 = vmatprep.subr.bf16.mxu0 0
        %815 = vmatpush1.bf16.msra.mxu0 0
        %816 = vmatprep.subr.bf16.mxu0 0
        %817 = vmatpush1.bf16.msra.mxu0 0
        %818 = vmatprep.subr.bf16.mxu0 0
        %819 = vmatpush1.bf16.msra.mxu0 0
        %820 = vmatprep.subr.bf16.mxu0 0
        %821 = vmatpush1.bf16.msra.mxu0 0
        %822 = vmatprep.subr.bf16.mxu0 0
        %823 = vmatpush1.bf16.msra.mxu0 0
        %824 = vmatprep.subr.bf16.mxu0 0
        %825 = vmatpush1.bf16.msra.mxu0 0
        %826 = vmatprep.subr.bf16.mxu0 0
        %827 = vmatpush1.bf16.msra.mxu0 0
        %828 = vmatprep.subr.bf16.mxu0 0
        %829 = vmatpush1.bf16.msra.mxu0 %v812
        %830 = vmatprep.subr.bf16.mxu0 0
        %831 = vmatpush2.bf16.msra.mxu0 0
        %832 = vmatprep.subr.bf16.mxu0 0
        %833 = vmatpush2.bf16.msra.mxu0 0
        %834 = vmatprep.subr.bf16.mxu0 0
        %835 = vmatpush2.bf16.msra.mxu0 0
        %836 = vmatprep.subr.bf16.mxu0 0
        %837 = vmatpush2.bf16.msra.mxu0 0
        %838 = vmatprep.subr.bf16.mxu0 0
        %839 = vmatpush2.bf16.msra.mxu0 0
        %840 = vmatprep.subr.bf16.mxu0 0
        %841 = vmatpush2.bf16.msra.mxu0 0
        %842 = vmatprep.subr.bf16.mxu0 0
        %843 = vmatpush2.bf16.msra.mxu0 0
        %844 = vmatprep.subr.bf16.mxu0 0
        %845 = vmatpush2.bf16.msra.mxu0 0
        %846 = vmatprep.mubr.bf16.mxu0 0
        %847 = vmatmul.mubr.bf16.gmra.mxu0 %v809
        %v848 = vpop.f32.mrf.mxu0
        %v849 = vadd.f32 0.0, %v848
        %v850 = vpop.f32.mrf.mxu0
        %v851 = vpop.f32.mrf.mxu0
        %v852 = vpop.f32.mrf.mxu0
        %853 = vdwg.mxu0
        %v854 = vpack.c.bf16 %v849, %v849
        %v856 = vunpack.c.l.b16 %v854
        %v857 = vpack.c.b16 %v856, %v856
        %858 = vrot.lane.b32.xlu0 %v857, 16
        %v859 = vpop.permute.xlu0 %858
        %vm861 = vcmask 191616
        %862 = vst.msk [vmem:[#allocation2] sm:$0xf] %vm861, %v859
        %863 = vrot.lane.b32.xlu0 %v507, 104
        %v864 = vpop.permute.xlu0 %863
        %865 = vrot.lane.b32.xlu0 %v507, 72
        %v866 = vpop.permute.xlu0 %865
        %v868 = vsel %vm511, %v864, 0
        %v871 = vsel %vm511, %v866, 0
        %873 = vmatprep.subr.bf16.mxu0 0
        %874 = vmatpush1.bf16.xpose.msra.mxu0 0
        %875 = vmatprep.subr.bf16.mxu0 0
        %876 = vmatpush1.bf16.xpose.msra.mxu0 0
        %877 = vmatprep.subr.bf16.mxu0 0
        %878 = vmatpush1.bf16.xpose.msra.mxu0 0
        %879 = vmatprep.subr.bf16.mxu0 0
        %880 = vmatpush1.bf16.xpose.msra.mxu0 0
        %881 = vmatprep.subr.bf16.mxu0 0
        %882 = vmatpush1.bf16.xpose.msra.mxu0 0
        %883 = vmatprep.subr.bf16.mxu0 0
        %884 = vmatpush1.bf16.xpose.msra.mxu0 0
        %885 = vmatprep.subr.bf16.mxu0 0
        %886 = vmatpush1.bf16.xpose.msra.mxu0 0
        %887 = vmatprep.subr.bf16.mxu0 0
        %888 = vmatpush1.bf16.xpose.msra.mxu0 %v871
        %889 = vmatprep.subr.bf16.mxu0 0
        %890 = vmatpush2.bf16.xpose.msra.mxu0 0
        %891 = vmatprep.subr.bf16.mxu0 0
        %892 = vmatpush2.bf16.xpose.msra.mxu0 0
        %893 = vmatprep.subr.bf16.mxu0 0
        %894 = vmatpush2.bf16.xpose.msra.mxu0 0
        %895 = vmatprep.subr.bf16.mxu0 0
        %896 = vmatpush2.bf16.xpose.msra.mxu0 0
        %897 = vmatprep.subr.bf16.mxu0 0
        %898 = vmatpush2.bf16.xpose.msra.mxu0 0
        %899 = vmatprep.subr.bf16.mxu0 0
        %900 = vmatpush2.bf16.xpose.msra.mxu0 0
        %901 = vmatprep.subr.bf16.mxu0 0
        %902 = vmatpush2.bf16.xpose.msra.mxu0 0
        %903 = vmatprep.subr.bf16.mxu0 0
        %904 = vmatpush2.bf16.xpose.msra.mxu0 0
        %905 = vmatprep.mubr.bf16.mxu0 0
        %906 = vmatmul.mubr.bf16.gmra.mxu0 %v868
        %v907 = vpop.f32.mrf.mxu0
        %v908 = vadd.f32 0.0, %v907
        %v909 = vpop.f32.mrf.mxu0
        %v910 = vpop.f32.mrf.mxu0
        %v911 = vpop.f32.mrf.mxu0
        %912 = vdwg.mxu0
        %v913 = vsel %vm506, %v908, -1e+30
        %v914 = vsel %vm511, %v913, -inf
        %915 = vmax.xlane.f32.xlu0 %v914
        %v916 = vpop.xlane.xlu0 %915
        %v917 = vsub.f32 %v913, %v916
        %v918 = vmul.f32 %v917, 1.442695
        %v919 = vpow.pop %v918
        %v920 = vsel %vm511, %v919, 0.0
        %921 = vadd.xlane.f32.xlu0 %v920
        %v922 = vpop.xlane.xlu0 %921
        %v923 = vrcp.pop %v922
        %v924 = vmul.f32 %v919, %v923
        %v925 = vpack.c.bf16 %v924, %v924
        %926 = vrot.lane.b32.xlu0 %v507, 40
        %v927 = vpop.permute.xlu0 %926
        %v929 = vsel %vm511, %v925, 0
        %v932 = vsel %vm576, %v927, 0
        %934 = vmatprep.subr.bf16.mxu0 0
        %935 = vmatpush1.bf16.msra.mxu0 0
        %936 = vmatprep.subr.bf16.mxu0 0
        %937 = vmatpush1.bf16.msra.mxu0 0
        %938 = vmatprep.subr.bf16.mxu0 0
        %939 = vmatpush1.bf16.msra.mxu0 0
        %940 = vmatprep.subr.bf16.mxu0 0
        %941 = vmatpush1.bf16.msra.mxu0 0
        %942 = vmatprep.subr.bf16.mxu0 0
        %943 = vmatpush1.bf16.msra.mxu0 0
        %944 = vmatprep.subr.bf16.mxu0 0
        %945 = vmatpush1.bf16.msra.mxu0 0
        %946 = vmatprep.subr.bf16.mxu0 0
        %947 = vmatpush1.bf16.msra.mxu0 0
        %948 = vmatprep.subr.bf16.mxu0 0
        %949 = vmatpush1.bf16.msra.mxu0 %v932
        %950 = vmatprep.subr.bf16.mxu0 0
        %951 = vmatpush2.bf16.msra.mxu0 0
        %952 = vmatprep.subr.bf16.mxu0 0
        %953 = vmatpush2.bf16.msra.mxu0 0
        %954 = vmatprep.subr.bf16.mxu0 0
        %955 = vmatpush2.bf16.msra.mxu0 0
        %956 = vmatprep.subr.bf16.mxu0 0
        %957 = vmatpush2.bf16.msra.mxu0 0
        %958 = vmatprep.subr.bf16.mxu0 0
        %959 = vmatpush2.bf16.msra.mxu0 0
        %960 = vmatprep.subr.bf16.mxu0 0
        %961 = vmatpush2.bf16.msra.mxu0 0
        %962 = vmatprep.subr.bf16.mxu0 0
        %963 = vmatpush2.bf16.msra.mxu0 0
        %964 = vmatprep.subr.bf16.mxu0 0
        %965 = vmatpush2.bf16.msra.mxu0 0
        %966 = vmatprep.mubr.bf16.mxu0 0
        %967 = vmatmul.mubr.bf16.gmra.mxu0 %v929
        %v968 = vpop.f32.mrf.mxu0
        %v969 = vadd.f32 0.0, %v968
        %v970 = vpop.f32.mrf.mxu0
        %v971 = vpop.f32.mrf.mxu0
        %v972 = vpop.f32.mrf.mxu0
        %973 = vdwg.mxu0
        %v974 = vpack.c.bf16 %v969, %v969
        %v976 = vunpack.c.l.b16 %v974
        %v977 = vpack.c.b16 %v976, %v976
        %978 = vrot.lane.b32.xlu0 %v977, 24
        %v979 = vpop.permute.xlu0 %978
        %vm981 = vcmask 257216
        %982 = vst.msk [vmem:[#allocation2] sm:$0xf] %vm981, %v979
        %v983 = vld [vmem:[#allocation2] sm:$0xf]
        %v984 = vld [vmem:[%s4] sm:$0xf]
        %v985 = vld [vmem:[%s4 + $0x4] sm:$0xf]
        %v986 = vld [vmem:[%s4 + $0x8] sm:$0xf]
        %v987 = vld [vmem:[%s4 + $0xc] sm:$0xf]
        %v988 = vld [vmem:[%s5] sm:$0x1]
        %v990 = vlaneseq
        %v991 = vshrl.u32 %v990, 7
        %v992 = vsub.s32 0, %v991
        %v993 = vrot.slane %v988, %v992
        %v999 = vunpack.c.l.b16 %v984
        %v1000 = vunpack.c.l.b16 %v985
        %v1001 = vunpack.c.l.b16 %v986
        %v1002 = vunpack.c.l.b16 %v987
        %v1003 = vpack.c.b16 %v1000, %v999
        %v1004 = vpack.c.b16 %v1002, %v1001
        %v1008 = vsel %vm411, %v983, 0
        %1010 = vmatprep.subr.bf16.mxu0 0
        %1011 = vmatpush1.bf16.msra.mxu0 0
        %1012 = vmatprep.subr.bf16.mxu0 0
        %1013 = vmatpush1.bf16.msra.mxu0 0
        %1014 = vmatprep.subr.bf16.mxu0 0
        %1015 = vmatpush1.bf16.msra.mxu0 0
        %1016 = vmatprep.subr.bf16.mxu0 0
        %1017 = vmatpush1.bf16.msra.mxu0 0
        %1018 = vmatprep.subr.bf16.mxu0 0
        %1019 = vmatpush1.bf16.msra.mxu0 0
        %1020 = vmatprep.subr.bf16.mxu0 0
        %1021 = vmatpush1.bf16.msra.mxu0 0
        %1022 = vmatprep.subr.bf16.mxu0 0
        %1023 = vmatpush1.bf16.msra.mxu0 %v1004
        %1024 = vmatprep.subr.bf16.mxu0 0
        %1025 = vmatpush1.bf16.msra.mxu0 %v1003
        %1026 = vmatprep.subr.bf16.mxu0 0
        %1027 = vmatpush2.bf16.msra.mxu0 0
        %1028 = vmatprep.subr.bf16.mxu0 0
        %1029 = vmatpush2.bf16.msra.mxu0 0
        %1030 = vmatprep.subr.bf16.mxu0 0
        %1031 = vmatpush2.bf16.msra.mxu0 0
        %1032 = vmatprep.subr.bf16.mxu0 0
        %1033 = vmatpush2.bf16.msra.mxu0 0
        %1034 = vmatprep.subr.bf16.mxu0 0
        %1035 = vmatpush2.bf16.msra.mxu0 0
        %1036 = vmatprep.subr.bf16.mxu0 0
        %1037 = vmatpush2.bf16.msra.mxu0 0
        %1038 = vmatprep.subr.bf16.mxu0 0
        %1039 = vmatpush2.bf16.msra.mxu0 0
        %1040 = vmatprep.subr.bf16.mxu0 0
        %1041 = vmatpush2.bf16.msra.mxu0 0
        %1042 = vmatprep.mubr.bf16.mxu0 0
        %1043 = vmatmul.mubr.bf16.gmra.mxu0 %v1008
        %v1044 = vpop.f32.mrf.mxu0
        %v1045 = vadd.f32 %v993, %v1044
        %v1046 = vpop.f32.mrf.mxu0
        %v1047 = vpop.f32.mrf.mxu0
        %v1048 = vpop.f32.mrf.mxu0
        %1049 = vdwg.mxu0
        %v1050 = vadd.f32 %v410, %v1045
        %v1051 = vsel %vm411, %v1050, 0.0
        %1052 = vadd.xlane.f32.xlu0 %v1051
        %v1053 = vpop.xlane.xlu0 %1052
        %v1054 = vmul.f32 %v1053, %v415
        %v1055 = vsub.f32 %v1050, %v1054
        %v1056 = vmul.f32 %v1055, %v1055
        %v1057 = vsel %vm411, %v1056, 0.0
        %1058 = vadd.xlane.f32.xlu0 %v1057
        %v1059 = vpop.xlane.xlu0 %1058
        %v1060 = vmul.f32 %v1059, %v415
        %v1061 = vadd.f32 %v1060, 1e-05
        %v1062 = vrsqrt.pop %v1061
        %v1063 = vmul.f32 %v1055, %v1062
        %v1064 = vld [vmem:[%s6] sm:$0x1]
        %v1066 = vlaneseq
        %v1067 = vshrl.u32 %v1066, 7
        %v1068 = vsub.s32 0, %v1067
        %v1069 = vrot.slane %v1064, %v1068
        %v1071 = vmul.f32 %v1063, %v1069
        %v1072 = vld [vmem:[%s7] sm:$0x1]
        %v1074 = vlaneseq
        %v1075 = vshrl.u32 %v1074, 7
        %v1076 = vsub.s32 0, %v1075
        %v1077 = vrot.slane %v1072, %v1076
        %v1079 = vadd.f32 %v1071, %v1077
        %v1080 = vpack.c.bf16 %v1079, %v1079
        %v1081 = vld [vmem:[%s8] sm:$0xf]
        %v1082 = vld [vmem:[%s8 + $0x4] sm:$0xf]
        %v1083 = vld [vmem:[%s8 + $0x8] sm:$0xf]
        %v1084 = vld [vmem:[%s8 + $0xc] sm:$0xf]
        %v1085 = vld [vmem:[%s9] sm:$0x1]
        %v1087 = vlaneseq
        %v1088 = vshrl.u32 %v1087, 7
        %v1089 = vsub.s32 0, %v1088
        %v1090 = vrot.slane %v1085, %v1089
        %v1096 = vunpack.c.l.b16 %v1081
        %v1097 = vunpack.c.l.b16 %v1082
        %v1098 = vunpack.c.l.b16 %v1083
        %v1099 = vunpack.c.l.b16 %v1084
        %v1100 = vpack.c.b16 %v1097, %v1096
        %v1101 = vpack.c.b16 %v1099, %v1098
        %v1105 = vsel %vm411, %v1080, 0
        %1107 = vmatprep.subr.bf16.mxu0 0
        %1108 = vmatpush1.bf16.msra.mxu0 0
        %1109 = vmatprep.subr.bf16.mxu0 0
        %1110 = vmatpush1.bf16.msra.mxu0 0
        %1111 = vmatprep.subr.bf16.mxu0 0
        %1112 = vmatpush1.bf16.msra.mxu0 0
        %1113 = vmatprep.subr.bf16.mxu0 0
        %1114 = vmatpush1.bf16.msra.mxu0 0
        %1115 = vmatprep.subr.bf16.mxu0 0
        %1116 = vmatpush1.bf16.msra.mxu0 0
        %1117 = vmatprep.subr.bf16.mxu0 0
        %1118 = vmatpush1.bf16.msra.mxu0 0
        %1119 = vmatprep.subr.bf16.mxu0 0
        %1120 = vmatpush1.bf16.msra.mxu0 %v1101
        %1121 = vmatprep.subr.bf16.mxu0 0
        %1122 = vmatpush1.bf16.msra.mxu0 %v1100
        %1123 = vmatprep.subr.bf16.mxu0 0
        %1124 = vmatpush2.bf16.msra.mxu0 0
        %1125 = vmatprep.subr.bf16.mxu0 0
        %1126 = vmatpush2.bf16.msra.mxu0 0
        %1127 = vmatprep.subr.bf16.mxu0 0
        %1128 = vmatpush2.bf16.msra.mxu0 0
        %1129 = vmatprep.subr.bf16.mxu0 0
        %1130 = vmatpush2.bf16.msra.mxu0 0
        %1131 = vmatprep.subr.bf16.mxu0 0
        %1132 = vmatpush2.bf16.msra.mxu0 0
        %1133 = vmatprep.subr.bf16.mxu0 0
        %1134 = vmatpush2.bf16.msra.mxu0 0
        %1135 = vmatprep.subr.bf16.mxu0 0
        %1136 = vmatpush2.bf16.msra.mxu0 0
        %1137 = vmatprep.subr.bf16.mxu0 0
        %1138 = vmatpush2.bf16.msra.mxu0 0
        %1139 = vmatprep.mubr.bf16.mxu0 0
        %1140 = vmatmul.mubr.bf16.gmra.mxu0 %v1105
        %v1141 = vpop.f32.mrf.mxu0
        %v1142 = vadd.f32 %v1090, %v1141
        %v1143 = vpop.f32.mrf.mxu0
        %v1144 = vpop.f32.mrf.mxu0
        %v1145 = vpop.f32.mrf.mxu0
        %1146 = vdwg.mxu0
        %v1147 = vmax.f32 %v1142, 0.0
        %v1148 = vpack.c.bf16 %v1147, %v1147
        %v1149 = vld [vmem:[%s10] sm:$0xf]
        %v1150 = vld [vmem:[%s10 + $0x4] sm:$0xf]
        %v1151 = vld [vmem:[%s10 + $0x8] sm:$0xf]
        %v1152 = vld [vmem:[%s10 + $0xc] sm:$0xf]
        %v1153 = vld [vmem:[%s10 + $0x10] sm:$0xf]
        %v1154 = vld [vmem:[%s10 + $0x14] sm:$0xf]
        %v1155 = vld [vmem:[%s10 + $0x18] sm:$0xf]
        %v1156 = vld [vmem:[%s10 + $0x1c] sm:$0xf]
        %v1157 = vld [vmem:[%s10 + $0x20] sm:$0xf]
        %v1158 = vld [vmem:[%s10 + $0x24] sm:$0xf]
        %v1159 = vld [vmem:[%s10 + $0x28] sm:$0xf]
        %v1160 = vld [vmem:[%s10 + $0x2c] sm:$0xf]
        %v1161 = vld [vmem:[%s10 + $0x30] sm:$0xf]
        %v1162 = vld [vmem:[%s10 + $0x34] sm:$0xf]
        %v1163 = vld [vmem:[%s10 + $0x38] sm:$0xf]
        %v1164 = vld [vmem:[%s10 + $0x3c] sm:$0xf]
        %v1165 = vld [vmem:[%s11] sm:$0x1]
        %v1167 = vlaneseq
        %v1168 = vshrl.u32 %v1167, 7
        %v1169 = vsub.s32 0, %v1168
        %v1170 = vrot.slane %v1165, %v1169
        %v1188 = vunpack.c.l.b16 %v1149
        %v1189 = vunpack.c.l.b16 %v1150
        %v1190 = vunpack.c.l.b16 %v1151
        %v1191 = vunpack.c.l.b16 %v1152
        %v1192 = vunpack.c.l.b16 %v1153
        %v1193 = vunpack.c.l.b16 %v1154
        %v1194 = vunpack.c.l.b16 %v1155
        %v1195 = vunpack.c.l.b16 %v1156
        %v1196 = vunpack.c.l.b16 %v1157
        %v1197 = vunpack.c.l.b16 %v1158
        %v1198 = vunpack.c.l.b16 %v1159
        %v1199 = vunpack.c.l.b16 %v1160
        %v1200 = vunpack.c.l.b16 %v1161
        %v1201 = vunpack.c.l.b16 %v1162
        %v1202 = vunpack.c.l.b16 %v1163
        %v1203 = vunpack.c.l.b16 %v1164
        %v1204 = vpack.c.b16 %v1189, %v1188
        %v1205 = vpack.c.b16 %v1191, %v1190
        %v1206 = vpack.c.b16 %v1193, %v1192
        %v1207 = vpack.c.b16 %v1195, %v1194
        %v1208 = vpack.c.b16 %v1197, %v1196
        %v1209 = vpack.c.b16 %v1199, %v1198
        %v1210 = vpack.c.b16 %v1201, %v1200
        %v1211 = vpack.c.b16 %v1203, %v1202
        %1220 = vmatprep.subr.bf16.mxu0 0
        %1221 = vmatpush1.bf16.msra.mxu0 %v1211
        %1222 = vmatprep.subr.bf16.mxu0 0
        %1223 = vmatpush1.bf16.msra.mxu0 %v1210
        %1224 = vmatprep.subr.bf16.mxu0 0
        %1225 = vmatpush1.bf16.msra.mxu0 %v1209
        %1226 = vmatprep.subr.bf16.mxu0 0
        %1227 = vmatpush1.bf16.msra.mxu0 %v1208
        %1228 = vmatprep.subr.bf16.mxu0 0
        %1229 = vmatpush1.bf16.msra.mxu0 %v1207
        %1230 = vmatprep.subr.bf16.mxu0 0
        %1231 = vmatpush1.bf16.msra.mxu0 %v1206
        %1232 = vmatprep.subr.bf16.mxu0 0
        %1233 = vmatpush1.bf16.msra.mxu0 %v1205
        %1234 = vmatprep.subr.bf16.mxu0 0
        %1235 = vmatpush1.bf16.msra.mxu0 %v1204
        %1236 = vmatprep.subr.bf16.mxu0 0
        %1237 = vmatpush2.bf16.msra.mxu0 0
        %1238 = vmatprep.subr.bf16.mxu0 0
        %1239 = vmatpush2.bf16.msra.mxu0 0
        %1240 = vmatprep.subr.bf16.mxu0 0
        %1241 = vmatpush2.bf16.msra.mxu0 0
        %1242 = vmatprep.subr.bf16.mxu0 0
        %1243 = vmatpush2.bf16.msra.mxu0 0
        %1244 = vmatprep.subr.bf16.mxu0 0
        %1245 = vmatpush2.bf16.msra.mxu0 0
        %1246 = vmatprep.subr.bf16.mxu0 0
        %1247 = vmatpush2.bf16.msra.mxu0 0
        %1248 = vmatprep.subr.bf16.mxu0 0
        %1249 = vmatpush2.bf16.msra.mxu0 0
        %1250 = vmatprep.subr.bf16.mxu0 0
        %1251 = vmatpush2.bf16.msra.mxu0 0
        %1252 = vmatprep.mubr.bf16.mxu0 0
        %1253 = vmatmul.mubr.bf16.gmra.mxu0 %v1148
        %v1254 = vpop.f32.mrf.mxu0
        %v1255 = vadd.f32 %v1170, %v1254
        %v1256 = vpop.f32.mrf.mxu0
        %v1257 = vpop.f32.mrf.mxu0
        %v1258 = vpop.f32.mrf.mxu0
        %1259 = vdwg.mxu0
        %v1260 = vadd.f32 %v1050, %v1255
        %1261 = vst.msk [vmem:[%s404] sm:$0xff] %vm411, %v1260
        %s1262 = sand.u32 %s291, 1
        %s1263 = scalar_lea.sflag [#allocation4], %s1262
        %s1264 = sand.u32 %s291, 1
        %s1265 = smul.addr %s1264, 8
        %s1266 = scalar_lea.vmem [#allocation3], %s1265
        // Predicated region
        $region69: #{tpu_custom_call.1} parent=67 // pred_check
          %p1267 = pneg %p301
        $region70: #{tpu_custom_call.1} parent=67 // pred_check_branch
          %1269 = sbr.rel (%p1267) target = $region72
        $region71: #{tpu_custom_call.1} parent=67 // pred_region
          %s1271 = ssub.s32 128, 128
          %1272 = vsyncadd %s1263, %s1271
          %s1273 = smul.addr %s26, 128
          %s1274 = scalar_lea.hbm %s12, %s1273
          %s1276 = sshll.u32 %s1266, 4
          %s1277 = int_to_ptr.vmem [resolvable:$true] %s1276
          %1279 = dma.vmem_to_hbm [thread:$0]  %s1277, 128, %s1274, %s1263
        $region72: #{tpu_custom_call.1} parent=67 // pred_fallthru
          _
      $region68: #{tpu_custom_call.1} parent=5 // pred_fallthru
        _
      %p1280 = scmp.le.s32.totalorder 2, %s21
      // Predicated region
      $region73: #{tpu_custom_call.1} parent=5 // pred_check
        %p1281 = pneg %p1280
      $region74: #{tpu_custom_call.1} parent=5 // pred_check_branch
        %1283 = sbr.rel (%p1281) target = $region76
      $region75: #{tpu_custom_call.1} parent=5 // pred_region
        %s1284 = ssub.s32 %s21, 2
        // Predicated region
        $region77: #{tpu_custom_call.1} parent=75 // pred_check
          %p1285 = pneg %p307
        $region78: #{tpu_custom_call.1} parent=75 // pred_check_branch
          %1287 = sbr.rel (%p1285) target = $region80
        $region79: #{tpu_custom_call.1} parent=75 // pred_region
          %s1288 = sand.u32 %s292, 1
          %s1289 = scalar_lea.sflag [#allocation4], %s1288
          %s1290 = sand.u32 %s292, 1
          %s1291 = smul.addr %s1290, 8
          %s1292 = scalar_lea.vmem [#allocation3], %s1291
          %1293 = dma.done %s1289, 128
        $region80: #{tpu_custom_call.1} parent=75 // pred_fallthru
          _
      $region76: #{tpu_custom_call.1} parent=5 // pred_fallthru
        _
    $region6: #{tpu_custom_call.1} parent=1 // loop_footer
      %s25 = sadd.s32 1, %s21
    $region7: #{tpu_custom_call.1} parent=1 // loop_footer_branch
      %20 = sbr.rel target = $region3
    $region8: #{tpu_custom_call.1} parent=1 // loop_exit
      _
    %1294 = vsyncpa [#allocation4], 1
    %s1295 = scalar_lea.sflag [#allocation4], 1
    %1296 = vsyncpa %s1295, 1

</llo_original>
